<compile_context>
chip_gen: v7x
topology: tpu7x:2x2x1
jax: 0.10.0
libtpu: 0.0.40
codegen_flags: <defaults>
</compile_context>

<pallas_src>
import functools

import jax
import jax.numpy as jnp
from jax import lax
from jax.experimental import pallas as pl
from jax.experimental.pallas import tpu as pltpu


def gru_value_kernel(idx_ref, tbl_ref, wh_ref, bhn_ref, wfc_ref, bfc_ref,
                     out_ref, *, batch):
    """Fused embedding (one-hot select) + GRU recurrence + Linear(H, 1) head.

    idx_ref : (S*B, 1) int32  token ids, seq-major flattened
    tbl_ref : (V, 3H)  f32    [emb@W_ir^T+b | emb@W_iz^T+b | emb@W_in^T+b_in] per gate
    wh_ref  : (H, 3H)  f32    [W_hr^T | W_hz^T | W_hn^T]
    bhn_ref : (1, H)   f32    b_hh_n (cannot be folded: lives inside r * (...))
    wfc_ref : (1, H)   f32    fc weight row
    bfc_ref : (1, 1)   f32    fc bias
    out_ref : (1, S*B) f32    lane-dense value-head output, seq-major
    """
    SB = idx_ref.shape[0]
    V = tbl_ref.shape[0]
    H = wh_ref.shape[0]
    B = batch
    S = SB // B

    # ---- Embedding + input projection for ALL gates: one hoisted matmul --------
    # one_hot(x) @ (emb @ W^T)  ==  embedding(x) @ W^T   (exact row selection).
    idx = idx_ref[...]                                              # (SB, 1) int32
    lane = lax.broadcasted_iota(jnp.int32, (SB, V), 1)              # (SB, V)
    onehot = (lane == idx).astype(jnp.float32)                      # (SB, V)
    gi = jnp.dot(onehot, tbl_ref[...],
                 precision=jax.lax.Precision.HIGHEST,               # keep selection exact
                 preferred_element_type=jnp.float32)                # (SB, 3H)

    w_h = wh_ref[...]                                               # (H, 3H)
    b_hn = jnp.broadcast_to(bhn_ref[...], (B, H))                   # hoisted, done ONCE

    # ---- Sequential GRU recurrence, fully unrolled (S is compile-time) ----------
    # Per step: ONE fused recurrent matmul + ONE sigmoid (r|z) + ONE tanh.
    hs = []
    h = jnp.zeros((B, H), jnp.float32)
    for t in range(S):
        lo = t * B                                                   # static, sublane-aligned
        gh = jnp.dot(h, w_h, preferred_element_type=jnp.float32)    # (B, 3H)
        rz = jax.nn.sigmoid(gi[lo:lo + B, 0:2 * H] + gh[:, 0:2 * H])
        r = rz[:, 0:H]
        z = rz[:, H:2 * H]
        n = jnp.tanh(gi[lo:lo + B, 2 * H:3 * H] + r * (gh[:, 2 * H:3 * H] + b_hn))
        h = (1.0 - z) * n + z * h
        hs.append(h)

    # ---- FC head, hoisted: hidden states stay in vregs, one matmul, one store --
    h_all = jnp.concatenate(hs, axis=0)                              # (SB, H), in vregs
    out = jnp.dot(wfc_ref[...], h_all.T,                             # (1, H) @ (H, SB)
                  preferred_element_type=jnp.float32)                # (1, SB) lane-dense
    out_ref[...] = out + bfc_ref[...]


def prepare_params(p):
    """Fold embedding + input projection + foldable biases into kernel-ready tables.

    One-time parameter transformation, mathematically identical to the torch forward:
      r = sigmoid(W_ir x + b_ir + W_hr h + b_hr)
      z = sigmoid(W_iz x + b_iz + W_hz h + b_hz)
      n = tanh  (W_in x + b_in + r * (W_hn h + b_hn))
      h' = (1 - z) * n + z * h
    """
    emb = p["emb"].astype(jnp.float32)        # (V, E)
    w_ih, w_hh = p["w_ih"], p["w_hh"]         # (3H, E), (3H, H)
    b_ih, b_hh = p["b_ih"], p["b_hh"]         # (3H,), (3H,)
    H = w_hh.shape[1]

    def gate(a, g):
        return a[g * H:(g + 1) * H]

    # r and z: both b_ih and b_hh enter additively before the sigmoid -> fold both.
    t_r = emb @ gate(w_ih, 0).T + (gate(b_ih, 0) + gate(b_hh, 0))[None, :]
    t_z = emb @ gate(w_ih, 1).T + (gate(b_ih, 1) + gate(b_hh, 1))[None, :]
    # n: only b_ih_n can be folded; b_hh_n is multiplied by r inside the kernel.
    t_n = emb @ gate(w_ih, 2).T + gate(b_ih, 2)[None, :]

    t_all = jnp.concatenate([t_r, t_z, t_n], axis=1)                # (V, 3H)
    w_h_all = jnp.concatenate(
        [gate(w_hh, 0).T, gate(w_hh, 1).T, gate(w_hh, 2).T], axis=1)  # (H, 3H)

    return {
        "t_all": t_all,                                             # (V, 3H)
        "w_h_all": w_h_all,                                         # (H, 3H)
        "b_hn": gate(b_hh, 2).reshape(1, H),                        # (1, H)
        "w_fc_row": p["w_fc"].reshape(1, H),                        # (1, H)
        "b_fc": p["b_fc"].reshape(1, 1),                            # (1, 1)
    }


def value_network_forward(x_idx, kparams):
    """x_idx: (S, B) int32 token ids. Returns (S, B, 1) f32, same as the torch module."""
    S, B = x_idx.shape
    assert B % 8 == 0, "batch must be a multiple of 8 (sublane tile); pad the batch"
    V, H3 = kparams["t_all"].shape
    H = H3 // 3
    SB = S * B
    idx2d = x_idx.reshape(SB, 1).astype(jnp.int32)

    full = lambda shape: pl.BlockSpec(shape, lambda i: (0, 0))

    flops = (2 * SB * V * 3 * H          # hoisted fused one-hot input projection
             + S * 2 * B * H * 3 * H     # fused recurrent matmuls
             + 2 * SB * H                # fc head
             + 12 * SB * H)              # gate elementwise math
    transcendentals = 3 * SB * H         # sigmoid(r|z) + tanh per hidden element
    bytes_accessed = 4 * (SB + V * 3 * H + H * 3 * H + 2 * H + 1 + SB)

    out = pl.pallas_call(
        functools.partial(gru_value_kernel, batch=B),
        out_shape=jax.ShapeDtypeStruct((1, SB), jnp.float32),
        grid=(1,),
        in_specs=[
            full((SB, 1)),
            full((V, 3 * H)),
            full((H, 3 * H)),
            full((1, H)),
            full((1, H)),
            full((1, 1)),
        ],
        out_specs=full((1, SB)),
        compiler_params=pltpu.CompilerParams(dimension_semantics=("arbitrary",)),
        cost_estimate=pl.CostEstimate(flops=flops,
                                      transcendentals=transcendentals,
                                      bytes_accessed=bytes_accessed),
    )(idx2d, kparams["t_all"], kparams["w_h_all"], kparams["b_hn"],
      kparams["w_fc_row"], kparams["b_fc"])

    # (1, SB) is seq-major; reshape to (S, B, 1) like torch fc(gru(embedding(x))[0]).
    return out.reshape(S, B, 1)


def value_network_reference(x_idx, params):
    """Pure-JAX reference reproducing torch nn.Embedding -> nn.GRU -> nn.Linear exactly."""
    x_emb = jnp.take(params["emb"], x_idx, axis=0).astype(jnp.float32)   # (S, B, E)
    H = params["w_hh"].shape[1]
    B = x_idx.shape[1]
    w_ih_t = params["w_ih"].T        # (E, 3H)
    w_hh_t = params["w_hh"].T        # (H, 3H)
    b_ih, b_hh = params["b_ih"], params["b_hh"]

    def step(h, x_t):
        gi = x_t @ w_ih_t + b_ih
        gh = h @ w_hh_t + b_hh
        r = jax.nn.sigmoid(gi[:, 0:H] + gh[:, 0:H])
        z = jax.nn.sigmoid(gi[:, H:2 * H] + gh[:, H:2 * H])
        n = jnp.tanh(gi[:, 2 * H:] + r * gh[:, 2 * H:])
        h_new = (1.0 - z) * n + z * h
        return h_new, h_new

    h0 = jnp.zeros((B, H), jnp.float32)
    _, hs = lax.scan(step, h0, x_emb)                   # (S, B, H)
    return hs @ params["w_fc"].T + params["b_fc"]       # (S, B, 1)


def init_params(key, num_inputs, hidden_size, embedding_size):
    """Deterministic synthetic init mirroring the torch module's parameter shapes."""
    V, H, E = num_inputs, hidden_size, embedding_size
    ks = jax.random.split(key, 7)
    bound = 1.0 / jnp.sqrt(jnp.float32(H))
    u = lambda k, shape: jax.random.uniform(k, shape, jnp.float32, -bound, bound)
    return {
        "emb": jax.random.normal(ks[0], (V, E), jnp.float32),   # nn.Embedding.weight
        "w_ih": u(ks[1], (3 * H, E)),                           # GRU weight_ih_l0
        "w_hh": u(ks[2], (3 * H, H)),                           # GRU weight_hh_l0
        "b_ih": u(ks[3], (3 * H,)),                             # GRU bias_ih_l0
        "b_hh": u(ks[4], (3 * H,)),                             # GRU bias_hh_l0
        "w_fc": u(ks[5], (1, H)),                               # nn.Linear(H, 1).weight
        "b_fc": u(ks[6], (1,)),                                 # nn.Linear(H, 1).bias
    }


if __name__ == "__main__":
    NUM_INPUTS = 16      # vocab size (e.g. number of amino-acid tokens)
    HIDDEN = 32
    EMBED = 32
    SEQ = 8              # seq-first, like torch GRU default
    BATCH = 8

    key = jax.random.PRNGKey(0)
    k_param, k_data = jax.random.split(key)
    params = init_params(k_param, NUM_INPUTS, HIDDEN, EMBED)
    kparams = prepare_params(params)
    x_idx = jax.random.randint(k_data, (SEQ, BATCH), 0, NUM_INPUTS, dtype=jnp.int32)

    out = value_network_forward(x_idx, kparams)
    out = jax.block_until_ready(out)

    ref = value_network_reference(x_idx, params)
    assert out.shape == (SEQ, BATCH, 1)
    assert jnp.allclose(out, ref, atol=5e-5, rtol=1e-5), "Pallas GRU mismatch vs reference"

    print("KERNEL_OK")
</pallas_src>

<mosaic_0001>
module attributes {stable_mosaic.version = 11 : i64} {
  func.func @gru_value_kernel(%arg0: i32, %arg1: memref<64x1xi32, #tpu.memory_space<vmem>>, %arg2: memref<16x96xf32, #tpu.memory_space<vmem>>, %arg3: memref<32x96xf32, #tpu.memory_space<vmem>>, %arg4: memref<1x32xf32, #tpu.memory_space<vmem>>, %arg5: memref<1x32xf32, #tpu.memory_space<vmem>>, %arg6: memref<1x1xf32, #tpu.memory_space<vmem>>, %arg7: memref<1x64xf32, #tpu.memory_space<vmem>>) attributes {dimension_semantics = [#tpu.dimension_semantics<arbitrary>], iteration_bounds = array<i64: 1>, scalar_prefetch = 0 : i64, scratch_operands = 0 : i64, tpu.core_type = #tpu.core_type<tc>, window_params = [{pipeline_mode = #tpu.pipeline_mode<synchronous>, transform_indices = @transform_0, window_bounds = array<i64: 64, 1>}, {pipeline_mode = #tpu.pipeline_mode<synchronous>, transform_indices = @transform_1, window_bounds = array<i64: 16, 96>}, {pipeline_mode = #tpu.pipeline_mode<synchronous>, transform_indices = @transform_2, window_bounds = array<i64: 32, 96>}, {pipeline_mode = #tpu.pipeline_mode<synchronous>, transform_indices = @transform_3, window_bounds = array<i64: 1, 32>}, {pipeline_mode = #tpu.pipeline_mode<synchronous>, transform_indices = @transform_4, window_bounds = array<i64: 1, 32>}, {pipeline_mode = #tpu.pipeline_mode<synchronous>, transform_indices = @transform_5, window_bounds = array<i64: 1, 1>}, {pipeline_mode = #tpu.pipeline_mode<synchronous>, transform_indices = @transform_6, window_bounds = array<i64: 1, 64>}]} {
    %c0 = arith.constant 0 : index
    %c0_0 = arith.constant 0 : index
    %0 = vector.load %arg1[%c0, %c0_0] : memref<64x1xi32, #tpu.memory_space<vmem>>, vector<64x1xi32>
    %1 = tpu.iota {dimensions = array<i32: 1>} : vector<64x16xi32>
    %2 = vector.broadcast %0 : vector<64x1xi32> to vector<64x16xi32>
    %3 = arith.cmpi eq, %1, %2 : vector<64x16xi32>
    %4 = arith.extui %3 : vector<64x16xi1> to vector<64x16xi32>
    %5 = arith.sitofp %4 : vector<64x16xi32> to vector<64x16xf32>
    %c0_1 = arith.constant 0 : index
    %c0_2 = arith.constant 0 : index
    %6 = vector.load %arg2[%c0_1, %c0_2] : memref<16x96xf32, #tpu.memory_space<vmem>>, vector<16x96xf32>
    %cst = arith.constant dense<0.000000e+00> : vector<64x96xf32>
    %7 = tpu.matmul %5, %6, %cst {dimension_numbers = #tpu.dot_dimension_numbers<[1], [0], [0], [1], [0, 0, 1, 1], [], []>, precision = #tpu.contract_precision<fp32>} : vector<64x16xf32>, vector<16x96xf32>, vector<64x96xf32> -> vector<64x96xf32>
    %c0_3 = arith.constant 0 : index
    %c0_4 = arith.constant 0 : index
    %8 = vector.load %arg3[%c0_3, %c0_4] : memref<32x96xf32, #tpu.memory_space<vmem>>, vector<32x96xf32>
    %c0_5 = arith.constant 0 : index
    %c0_6 = arith.constant 0 : index
    %9 = vector.load %arg4[%c0_5, %c0_6] : memref<1x32xf32, #tpu.memory_space<vmem>>, vector<1x32xf32>
    %10 = vector.shape_cast %9 : vector<1x32xf32> to vector<1x32xf32>
    %11 = vector.broadcast %10 : vector<1x32xf32> to vector<8x32xf32>
    %cst_7 = arith.constant 0.000000e+00 : f32
    %12 = vector.broadcast %cst_7 : f32 to vector<8x32xf32>
    %cst_8 = arith.constant dense<0.000000e+00> : vector<8x96xf32>
    %13 = tpu.matmul %12, %8, %cst_8 {dimension_numbers = #tpu.dot_dimension_numbers<[1], [0], [0], [1], [0, 0, 1, 1], [], []>} : vector<8x32xf32>, vector<32x96xf32>, vector<8x96xf32> -> vector<8x96xf32>
    %14 = vector.extract_strided_slice %7 {offsets = [0, 0], sizes = [8, 64], strides = [1, 1]} : vector<64x96xf32> to vector<8x64xf32>
    %15 = vector.extract_strided_slice %13 {offsets = [0, 0], sizes = [8, 64], strides = [1, 1]} : vector<8x96xf32> to vector<8x64xf32>
    %16 = arith.addf %14, %15 : vector<8x64xf32>
    %17 = arith.negf %16 : vector<8x64xf32>
    %18 = math.exp %17 : vector<8x64xf32>
    %cst_9 = arith.constant 1.000000e+00 : f32
    %19 = vector.broadcast %cst_9 : f32 to vector<8x64xf32>
    %20 = arith.addf %19, %18 : vector<8x64xf32>
    %21 = arith.divf %19, %20 : vector<8x64xf32>
    %22 = vector.extract_strided_slice %21 {offsets = [0, 0], sizes = [8, 32], strides = [1, 1]} : vector<8x64xf32> to vector<8x32xf32>
    %23 = vector.extract_strided_slice %21 {offsets = [0, 32], sizes = [8, 32], strides = [1, 1]} : vector<8x64xf32> to vector<8x32xf32>
    %24 = vector.extract_strided_slice %7 {offsets = [0, 64], sizes = [8, 32], strides = [1, 1]} : vector<64x96xf32> to vector<8x32xf32>
    %25 = vector.extract_strided_slice %13 {offsets = [0, 64], sizes = [8, 32], strides = [1, 1]} : vector<8x96xf32> to vector<8x32xf32>
    %26 = arith.addf %25, %11 : vector<8x32xf32>
    %27 = arith.mulf %22, %26 : vector<8x32xf32>
    %28 = arith.addf %24, %27 : vector<8x32xf32>
    %29 = math.tanh %28 : vector<8x32xf32>
    %cst_10 = arith.constant 1.000000e+00 : f32
    %30 = vector.broadcast %cst_10 : f32 to vector<8x32xf32>
    %31 = arith.subf %30, %23 : vector<8x32xf32>
    %32 = arith.mulf %31, %29 : vector<8x32xf32>
    %33 = arith.mulf %23, %12 : vector<8x32xf32>
    %34 = arith.addf %32, %33 : vector<8x32xf32>
    %cst_11 = arith.constant dense<0.000000e+00> : vector<8x96xf32>
    %35 = tpu.matmul %34, %8, %cst_11 {dimension_numbers = #tpu.dot_dimension_numbers<[1], [0], [0], [1], [0, 0, 1, 1], [], []>} : vector<8x32xf32>, vector<32x96xf32>, vector<8x96xf32> -> vector<8x96xf32>
    %36 = vector.extract_strided_slice %7 {offsets = [8, 0], sizes = [8, 64], strides = [1, 1]} : vector<64x96xf32> to vector<8x64xf32>
    %37 = vector.extract_strided_slice %35 {offsets = [0, 0], sizes = [8, 64], strides = [1, 1]} : vector<8x96xf32> to vector<8x64xf32>
    %38 = arith.addf %36, %37 : vector<8x64xf32>
    %39 = arith.negf %38 : vector<8x64xf32>
    %40 = math.exp %39 : vector<8x64xf32>
    %cst_12 = arith.constant 1.000000e+00 : f32
    %41 = vector.broadcast %cst_12 : f32 to vector<8x64xf32>
    %42 = arith.addf %41, %40 : vector<8x64xf32>
    %43 = arith.divf %41, %42 : vector<8x64xf32>
    %44 = vector.extract_strided_slice %43 {offsets = [0, 0], sizes = [8, 32], strides = [1, 1]} : vector<8x64xf32> to vector<8x32xf32>
    %45 = vector.extract_strided_slice %43 {offsets = [0, 32], sizes = [8, 32], strides = [1, 1]} : vector<8x64xf32> to vector<8x32xf32>
    %46 = vector.extract_strided_slice %7 {offsets = [8, 64], sizes = [8, 32], strides = [1, 1]} : vector<64x96xf32> to vector<8x32xf32>
    %47 = vector.extract_strided_slice %35 {offsets = [0, 64], sizes = [8, 32], strides = [1, 1]} : vector<8x96xf32> to vector<8x32xf32>
    %48 = arith.addf %47, %11 : vector<8x32xf32>
    %49 = arith.mulf %44, %48 : vector<8x32xf32>
    %50 = arith.addf %46, %49 : vector<8x32xf32>
    %51 = math.tanh %50 : vector<8x32xf32>
    %cst_13 = arith.constant 1.000000e+00 : f32
    %52 = vector.broadcast %cst_13 : f32 to vector<8x32xf32>
    %53 = arith.subf %52, %45 : vector<8x32xf32>
    %54 = arith.mulf %53, %51 : vector<8x32xf32>
    %55 = arith.mulf %45, %34 : vector<8x32xf32>
    %56 = arith.addf %54, %55 : vector<8x32xf32>
    %cst_14 = arith.constant dense<0.000000e+00> : vector<8x96xf32>
    %57 = tpu.matmul %56, %8, %cst_14 {dimension_numbers = #tpu.dot_dimension_numbers<[1], [0], [0], [1], [0, 0, 1, 1], [], []>} : vector<8x32xf32>, vector<32x96xf32>, vector<8x96xf32> -> vector<8x96xf32>
    %58 = vector.extract_strided_slice %7 {offsets = [16, 0], sizes = [8, 64], strides = [1, 1]} : vector<64x96xf32> to vector<8x64xf32>
    %59 = vector.extract_strided_slice %57 {offsets = [0, 0], sizes = [8, 64], strides = [1, 1]} : vector<8x96xf32> to vector<8x64xf32>
    %60 = arith.addf %58, %59 : vector<8x64xf32>
    %61 = arith.negf %60 : vector<8x64xf32>
    %62 = math.exp %61 : vector<8x64xf32>
    %cst_15 = arith.constant 1.000000e+00 : f32
    %63 = vector.broadcast %cst_15 : f32 to vector<8x64xf32>
    %64 = arith.addf %63, %62 : vector<8x64xf32>
    %65 = arith.divf %63, %64 : vector<8x64xf32>
    %66 = vector.extract_strided_slice %65 {offsets = [0, 0], sizes = [8, 32], strides = [1, 1]} : vector<8x64xf32> to vector<8x32xf32>
    %67 = vector.extract_strided_slice %65 {offsets = [0, 32], sizes = [8, 32], strides = [1, 1]} : vector<8x64xf32> to vector<8x32xf32>
    %68 = vector.extract_strided_slice %7 {offsets = [16, 64], sizes = [8, 32], strides = [1, 1]} : vector<64x96xf32> to vector<8x32xf32>
    %69 = vector.extract_strided_slice %57 {offsets = [0, 64], sizes = [8, 32], strides = [1, 1]} : vector<8x96xf32> to vector<8x32xf32>
    %70 = arith.addf %69, %11 : vector<8x32xf32>
    %71 = arith.mulf %66, %70 : vector<8x32xf32>
    %72 = arith.addf %68, %71 : vector<8x32xf32>
    %73 = math.tanh %72 : vector<8x32xf32>
    %cst_16 = arith.constant 1.000000e+00 : f32
    %74 = vector.broadcast %cst_16 : f32 to vector<8x32xf32>
    %75 = arith.subf %74, %67 : vector<8x32xf32>
    %76 = arith.mulf %75, %73 : vector<8x32xf32>
    %77 = arith.mulf %67, %56 : vector<8x32xf32>
    %78 = arith.addf %76, %77 : vector<8x32xf32>
    %cst_17 = arith.constant dense<0.000000e+00> : vector<8x96xf32>
    %79 = tpu.matmul %78, %8, %cst_17 {dimension_numbers = #tpu.dot_dimension_numbers<[1], [0], [0], [1], [0, 0, 1, 1], [], []>} : vector<8x32xf32>, vector<32x96xf32>, vector<8x96xf32> -> vector<8x96xf32>
    %80 = vector.extract_strided_slice %7 {offsets = [24, 0], sizes = [8, 64], strides = [1, 1]} : vector<64x96xf32> to vector<8x64xf32>
    %81 = vector.extract_strided_slice %79 {offsets = [0, 0], sizes = [8, 64], strides = [1, 1]} : vector<8x96xf32> to vector<8x64xf32>
    %82 = arith.addf %80, %81 : vector<8x64xf32>
    %83 = arith.negf %82 : vector<8x64xf32>
    %84 = math.exp %83 : vector<8x64xf32>
    %cst_18 = arith.constant 1.000000e+00 : f32
    %85 = vector.broadcast %cst_18 : f32 to vector<8x64xf32>
    %86 = arith.addf %85, %84 : vector<8x64xf32>
    %87 = arith.divf %85, %86 : vector<8x64xf32>
    %88 = vector.extract_strided_slice %87 {offsets = [0, 0], sizes = [8, 32], strides = [1, 1]} : vector<8x64xf32> to vector<8x32xf32>
    %89 = vector.extract_strided_slice %87 {offsets = [0, 32], sizes = [8, 32], strides = [1, 1]} : vector<8x64xf32> to vector<8x32xf32>
    %90 = vector.extract_strided_slice %7 {offsets = [24, 64], sizes = [8, 32], strides = [1, 1]} : vector<64x96xf32> to vector<8x32xf32>
    %91 = vector.extract_strided_slice %79 {offsets = [0, 64], sizes = [8, 32], strides = [1, 1]} : vector<8x96xf32> to vector<8x32xf32>
    %92 = arith.addf %91, %11 : vector<8x32xf32>
    %93 = arith.mulf %88, %92 : vector<8x32xf32>
    %94 = arith.addf %90, %93 : vector<8x32xf32>
    %95 = math.tanh %94 : vector<8x32xf32>
    %cst_19 = arith.constant 1.000000e+00 : f32
    %96 = vector.broadcast %cst_19 : f32 to vector<8x32xf32>
    %97 = arith.subf %96, %89 : vector<8x32xf32>
    %98 = arith.mulf %97, %95 : vector<8x32xf32>
    %99 = arith.mulf %89, %78 : vector<8x32xf32>
    %100 = arith.addf %98, %99 : vector<8x32xf32>
    %cst_20 = arith.constant dense<0.000000e+00> : vector<8x96xf32>
    %101 = tpu.matmul %100, %8, %cst_20 {dimension_numbers = #tpu.dot_dimension_numbers<[1], [0], [0], [1], [0, 0, 1, 1], [], []>} : vector<8x32xf32>, vector<32x96xf32>, vector<8x96xf32> -> vector<8x96xf32>
    %102 = vector.extract_strided_slice %7 {offsets = [32, 0], sizes = [8, 64], strides = [1, 1]} : vector<64x96xf32> to vector<8x64xf32>
    %103 = vector.extract_strided_slice %101 {offsets = [0, 0], sizes = [8, 64], strides = [1, 1]} : vector<8x96xf32> to vector<8x64xf32>
    %104 = arith.addf %102, %103 : vector<8x64xf32>
    %105 = arith.negf %104 : vector<8x64xf32>
    %106 = math.exp %105 : vector<8x64xf32>
    %cst_21 = arith.constant 1.000000e+00 : f32
    %107 = vector.broadcast %cst_21 : f32 to vector<8x64xf32>
    %108 = arith.addf %107, %106 : vector<8x64xf32>
    %109 = arith.divf %107, %108 : vector<8x64xf32>
    %110 = vector.extract_strided_slice %109 {offsets = [0, 0], sizes = [8, 32], strides = [1, 1]} : vector<8x64xf32> to vector<8x32xf32>
    %111 = vector.extract_strided_slice %109 {offsets = [0, 32], sizes = [8, 32], strides = [1, 1]} : vector<8x64xf32> to vector<8x32xf32>
    %112 = vector.extract_strided_slice %7 {offsets = [32, 64], sizes = [8, 32], strides = [1, 1]} : vector<64x96xf32> to vector<8x32xf32>
    %113 = vector.extract_strided_slice %101 {offsets = [0, 64], sizes = [8, 32], strides = [1, 1]} : vector<8x96xf32> to vector<8x32xf32>
    %114 = arith.addf %113, %11 : vector<8x32xf32>
    %115 = arith.mulf %110, %114 : vector<8x32xf32>
    %116 = arith.addf %112, %115 : vector<8x32xf32>
    %117 = math.tanh %116 : vector<8x32xf32>
    %cst_22 = arith.constant 1.000000e+00 : f32
    %118 = vector.broadcast %cst_22 : f32 to vector<8x32xf32>
    %119 = arith.subf %118, %111 : vector<8x32xf32>
    %120 = arith.mulf %119, %117 : vector<8x32xf32>
    %121 = arith.mulf %111, %100 : vector<8x32xf32>
    %122 = arith.addf %120, %121 : vector<8x32xf32>
    %cst_23 = arith.constant dense<0.000000e+00> : vector<8x96xf32>
    %123 = tpu.matmul %122, %8, %cst_23 {dimension_numbers = #tpu.dot_dimension_numbers<[1], [0], [0], [1], [0, 0, 1, 1], [], []>} : vector<8x32xf32>, vector<32x96xf32>, vector<8x96xf32> -> vector<8x96xf32>
    %124 = vector.extract_strided_slice %7 {offsets = [40, 0], sizes = [8, 64], strides = [1, 1]} : vector<64x96xf32> to vector<8x64xf32>
    %125 = vector.extract_strided_slice %123 {offsets = [0, 0], sizes = [8, 64], strides = [1, 1]} : vector<8x96xf32> to vector<8x64xf32>
    %126 = arith.addf %124, %125 : vector<8x64xf32>
    %127 = arith.negf %126 : vector<8x64xf32>
    %128 = math.exp %127 : vector<8x64xf32>
    %cst_24 = arith.constant 1.000000e+00 : f32
    %129 = vector.broadcast %cst_24 : f32 to vector<8x64xf32>
    %130 = arith.addf %129, %128 : vector<8x64xf32>
    %131 = arith.divf %129, %130 : vector<8x64xf32>
    %132 = vector.extract_strided_slice %131 {offsets = [0, 0], sizes = [8, 32], strides = [1, 1]} : vector<8x64xf32> to vector<8x32xf32>
    %133 = vector.extract_strided_slice %131 {offsets = [0, 32], sizes = [8, 32], strides = [1, 1]} : vector<8x64xf32> to vector<8x32xf32>
    %134 = vector.extract_strided_slice %7 {offsets = [40, 64], sizes = [8, 32], strides = [1, 1]} : vector<64x96xf32> to vector<8x32xf32>
    %135 = vector.extract_strided_slice %123 {offsets = [0, 64], sizes = [8, 32], strides = [1, 1]} : vector<8x96xf32> to vector<8x32xf32>
    %136 = arith.addf %135, %11 : vector<8x32xf32>
    %137 = arith.mulf %132, %136 : vector<8x32xf32>
    %138 = arith.addf %134, %137 : vector<8x32xf32>
    %139 = math.tanh %138 : vector<8x32xf32>
    %cst_25 = arith.constant 1.000000e+00 : f32
    %140 = vector.broadcast %cst_25 : f32 to vector<8x32xf32>
    %141 = arith.subf %140, %133 : vector<8x32xf32>
    %142 = arith.mulf %141, %139 : vector<8x32xf32>
    %143 = arith.mulf %133, %122 : vector<8x32xf32>
    %144 = arith.addf %142, %143 : vector<8x32xf32>
    %cst_26 = arith.constant dense<0.000000e+00> : vector<8x96xf32>
    %145 = tpu.matmul %144, %8, %cst_26 {dimension_numbers = #tpu.dot_dimension_numbers<[1], [0], [0], [1], [0, 0, 1, 1], [], []>} : vector<8x32xf32>, vector<32x96xf32>, vector<8x96xf32> -> vector<8x96xf32>
    %146 = vector.extract_strided_slice %7 {offsets = [48, 0], sizes = [8, 64], strides = [1, 1]} : vector<64x96xf32> to vector<8x64xf32>
    %147 = vector.extract_strided_slice %145 {offsets = [0, 0], sizes = [8, 64], strides = [1, 1]} : vector<8x96xf32> to vector<8x64xf32>
    %148 = arith.addf %146, %147 : vector<8x64xf32>
    %149 = arith.negf %148 : vector<8x64xf32>
    %150 = math.exp %149 : vector<8x64xf32>
    %cst_27 = arith.constant 1.000000e+00 : f32
    %151 = vector.broadcast %cst_27 : f32 to vector<8x64xf32>
    %152 = arith.addf %151, %150 : vector<8x64xf32>
    %153 = arith.divf %151, %152 : vector<8x64xf32>
    %154 = vector.extract_strided_slice %153 {offsets = [0, 0], sizes = [8, 32], strides = [1, 1]} : vector<8x64xf32> to vector<8x32xf32>
    %155 = vector.extract_strided_slice %153 {offsets = [0, 32], sizes = [8, 32], strides = [1, 1]} : vector<8x64xf32> to vector<8x32xf32>
    %156 = vector.extract_strided_slice %7 {offsets = [48, 64], sizes = [8, 32], strides = [1, 1]} : vector<64x96xf32> to vector<8x32xf32>
    %157 = vector.extract_strided_slice %145 {offsets = [0, 64], sizes = [8, 32], strides = [1, 1]} : vector<8x96xf32> to vector<8x32xf32>
    %158 = arith.addf %157, %11 : vector<8x32xf32>
    %159 = arith.mulf %154, %158 : vector<8x32xf32>
    %160 = arith.addf %156, %159 : vector<8x32xf32>
    %161 = math.tanh %160 : vector<8x32xf32>
    %cst_28 = arith.constant 1.000000e+00 : f32
    %162 = vector.broadcast %cst_28 : f32 to vector<8x32xf32>
    %163 = arith.subf %162, %155 : vector<8x32xf32>
    %164 = arith.mulf %163, %161 : vector<8x32xf32>
    %165 = arith.mulf %155, %144 : vector<8x32xf32>
    %166 = arith.addf %164, %165 : vector<8x32xf32>
    %cst_29 = arith.constant dense<0.000000e+00> : vector<8x96xf32>
    %167 = tpu.matmul %166, %8, %cst_29 {dimension_numbers = #tpu.dot_dimension_numbers<[1], [0], [0], [1], [0, 0, 1, 1], [], []>} : vector<8x32xf32>, vector<32x96xf32>, vector<8x96xf32> -> vector<8x96xf32>
    %168 = vector.extract_strided_slice %7 {offsets = [56, 0], sizes = [8, 64], strides = [1, 1]} : vector<64x96xf32> to vector<8x64xf32>
    %169 = vector.extract_strided_slice %167 {offsets = [0, 0], sizes = [8, 64], strides = [1, 1]} : vector<8x96xf32> to vector<8x64xf32>
    %170 = arith.addf %168, %169 : vector<8x64xf32>
    %171 = arith.negf %170 : vector<8x64xf32>
    %172 = math.exp %171 : vector<8x64xf32>
    %cst_30 = arith.constant 1.000000e+00 : f32
    %173 = vector.broadcast %cst_30 : f32 to vector<8x64xf32>
    %174 = arith.addf %173, %172 : vector<8x64xf32>
    %175 = arith.divf %173, %174 : vector<8x64xf32>
    %176 = vector.extract_strided_slice %175 {offsets = [0, 0], sizes = [8, 32], strides = [1, 1]} : vector<8x64xf32> to vector<8x32xf32>
    %177 = vector.extract_strided_slice %175 {offsets = [0, 32], sizes = [8, 32], strides = [1, 1]} : vector<8x64xf32> to vector<8x32xf32>
    %178 = vector.extract_strided_slice %7 {offsets = [56, 64], sizes = [8, 32], strides = [1, 1]} : vector<64x96xf32> to vector<8x32xf32>
    %179 = vector.extract_strided_slice %167 {offsets = [0, 64], sizes = [8, 32], strides = [1, 1]} : vector<8x96xf32> to vector<8x32xf32>
    %180 = arith.addf %179, %11 : vector<8x32xf32>
    %181 = arith.mulf %176, %180 : vector<8x32xf32>
    %182 = arith.addf %178, %181 : vector<8x32xf32>
    %183 = math.tanh %182 : vector<8x32xf32>
    %cst_31 = arith.constant 1.000000e+00 : f32
    %184 = vector.broadcast %cst_31 : f32 to vector<8x32xf32>
    %185 = arith.subf %184, %177 : vector<8x32xf32>
    %186 = arith.mulf %185, %183 : vector<8x32xf32>
    %187 = arith.mulf %177, %166 : vector<8x32xf32>
    %188 = arith.addf %186, %187 : vector<8x32xf32>
    %189 = tpu.concatenate %34, %56, %78, %100, %122, %144, %166, %188 in 0 : vector<8x32xf32>, vector<8x32xf32>, vector<8x32xf32>, vector<8x32xf32>, vector<8x32xf32>, vector<8x32xf32>, vector<8x32xf32>, vector<8x32xf32> -> vector<64x32xf32>
    %c0_32 = arith.constant 0 : index
    %c0_33 = arith.constant 0 : index
    %190 = vector.load %arg5[%c0_32, %c0_33] : memref<1x32xf32, #tpu.memory_space<vmem>>, vector<1x32xf32>
    %191 = tpu.transpose %189, [1, 0] : vector<64x32xf32> -> vector<32x64xf32>
    %cst_34 = arith.constant dense<0.000000e+00> : vector<1x64xf32>
    %192 = tpu.matmul %190, %191, %cst_34 {dimension_numbers = #tpu.dot_dimension_numbers<[1], [0], [0], [1], [0, 0, 1, 1], [], []>} : vector<1x32xf32>, vector<32x64xf32>, vector<1x64xf32> -> vector<1x64xf32>
    %c0_35 = arith.constant 0 : index
    %c0_36 = arith.constant 0 : index
    %193 = vector.load %arg6[%c0_35, %c0_36] : memref<1x1xf32, #tpu.memory_space<vmem>>, vector<1x1xf32>
    %194 = vector.broadcast %193 : vector<1x1xf32> to vector<1x64xf32>
    %195 = arith.addf %192, %194 : vector<1x64xf32>
    %c0_37 = arith.constant 0 : index
    %c0_38 = arith.constant 0 : index
    %196 = vector.load %arg7[%c0_37, %c0_38] : memref<1x64xf32, #tpu.memory_space<vmem>>, vector<1x64xf32>
    tpu.vector_store %arg7[%c0_37, %c0_38], %195 {strides = array<i32>} : memref<1x64xf32, #tpu.memory_space<vmem>>, vector<1x64xf32>,
    return
  }
  func.func @transform_0(%arg0: i32) -> (i32, i32) {
    %c0_i32 = arith.constant 0 : i32
    %c0_i32_0 = arith.constant 0 : i32
    %c0_i32_1 = arith.constant 0 : i32
    return %c0_i32, %c0_i32_0 : i32, i32
  }
  func.func @transform_1(%arg0: i32) -> (i32, i32) {
    %c0_i32 = arith.constant 0 : i32
    %c0_i32_0 = arith.constant 0 : i32
    %c0_i32_1 = arith.constant 0 : i32
    return %c0_i32, %c0_i32_0 : i32, i32
  }
  func.func @transform_2(%arg0: i32) -> (i32, i32) {
    %c0_i32 = arith.constant 0 : i32
    %c0_i32_0 = arith.constant 0 : i32
    %c0_i32_1 = arith.constant 0 : i32
    return %c0_i32, %c0_i32_0 : i32, i32
  }
  func.func @transform_3(%arg0: i32) -> (i32, i32) {
    %c0_i32 = arith.constant 0 : i32
    %c0_i32_0 = arith.constant 0 : i32
    %c0_i32_1 = arith.constant 0 : i32
    return %c0_i32, %c0_i32_0 : i32, i32
  }
  func.func @transform_4(%arg0: i32) -> (i32, i32) {
    %c0_i32 = arith.constant 0 : i32
    %c0_i32_0 = arith.constant 0 : i32
    %c0_i32_1 = arith.constant 0 : i32
    return %c0_i32, %c0_i32_0 : i32, i32
  }
  func.func @transform_5(%arg0: i32) -> (i32, i32) {
    %c0_i32 = arith.constant 0 : i32
    %c0_i32_0 = arith.constant 0 : i32
    %c0_i32_1 = arith.constant 0 : i32
    return %c0_i32, %c0_i32_0 : i32, i32
  }
  func.func @transform_6(%arg0: i32) -> (i32, i32) {
    %c0_i32 = arith.constant 0 : i32
    %c0_i32_0 = arith.constant 0 : i32
    %c0_i32_1 = arith.constant 0 : i32
    return %c0_i32, %c0_i32_0 : i32, i32
  }
}

</mosaic_0001>

<llo_original>
// kernel: tpu_custom_call.1
$region0: #{tpu_custom_call.1}
  #allocation0 [shape = 'u32[]', space=smem, size = 0x4, offset = 0x4, fixed_abs, tag = 'smem constant byte address 0x4 - core index']
  #allocation1 [shape = 'u32[144,128]{1,0:T(1,128)}', space=vmem, size = 0x12000, scoped, tag = 'internal scratch']
  #allocation2 [shape = 'f32[1,1]{1,0:T(1,128)S(1)}', space=vmem, size = 0x200, scoped, tag = 'scoped memory for tpu_custom_call.1']
  %s0 = inlined_call_operand.vmem [shape: s32[64,1], index: 0, kind: input, shape index: {}]
  %s1 = inlined_call_operand.vmem [shape: f32[16,96], index: 1, kind: input, shape index: {}]
  %s2 = inlined_call_operand.vmem [shape: f32[32,96], index: 2, kind: input, shape index: {}]
  %s3 = inlined_call_operand.vmem [shape: f32[1,32], index: 3, kind: input, shape index: {}]
  %s4 = inlined_call_operand.vmem [shape: f32[1,32], index: 4, kind: input, shape index: {}]
  %s5 = inlined_call_operand.<no memory space> [shape: f32[1,1], index: 5, kind: input, shape index: {}]
  %s6 = inlined_call_operand.hbm [shape: f32[1,64], index: 6, kind: output, shape index: {}]
  %s7 = sld [smem:[#allocation0]]
  $region34: #{tpu_custom_call.1} parent=0
    _
  %s9 = ssub.s32 1, %s7
  %s10 = scalar_select 0, %s9, %s7
  %v11 = vstv %s5
  %12 = vst [vmem:[#allocation2] sm:$0x1] %v11
  $region1: #{tpu_custom_call.1} parent=0
    #allocation3 [shape = 'u8[512]{0}', space=vmem, size = 0x400, scoped, tag = 'output window, operand 0, single buffered']
    #allocation4 [shape = 's32[1]{0}', space=sflag, size = 0x4, scoped, tag = 'scoped memory for tpu_custom_call.1']
    %13 = vsyncpa [#allocation4], 0
    // Predicated region
    $region2: #{tpu_custom_call.1} parent=1 // pred_check
      _
    $region3: #{tpu_custom_call.1} parent=1 // pred_check_branch
      %15 = sbr.rel (0) target = $region5
    $region4: #{tpu_custom_call.1} parent=1 // pred_region
      _
    $region5: #{tpu_custom_call.1} parent=1 // pred_fallthru
      _
    // Predicated region
    $region6: #{tpu_custom_call.1} parent=1 // pred_check
      _
    $region7: #{tpu_custom_call.1} parent=1 // pred_check_branch
      %17 = sbr.rel (0) target = $region9
    $region8: #{tpu_custom_call.1} parent=1 // pred_region
      _
    $region9: #{tpu_custom_call.1} parent=1 // pred_fallthru
      _
    // Predicated region
    $region10: #{tpu_custom_call.1} parent=1 // pred_check
      _
    $region11: #{tpu_custom_call.1} parent=1 // pred_check_branch
      %19 = sbr.rel (0) target = $region13
    $region12: #{tpu_custom_call.1} parent=1 // pred_region
      _
    $region13: #{tpu_custom_call.1} parent=1 // pred_fallthru
      _
    // Predicated region
    $region14: #{tpu_custom_call.1} parent=1 // pred_check
      _
    $region15: #{tpu_custom_call.1} parent=1 // pred_check_branch
      %21 = sbr.rel (0) target = $region17
    $region16: #{tpu_custom_call.1} parent=1 // pred_region
      _
    $region17: #{tpu_custom_call.1} parent=1 // pred_fallthru
      _
    // Predicated region
    $region18: #{tpu_custom_call.1} parent=1 // pred_check
      _
    $region19: #{tpu_custom_call.1} parent=1 // pred_check_branch
      %23 = sbr.rel (0) target = $region21
    $region20: #{tpu_custom_call.1} parent=1 // pred_region
      _
    $region21: #{tpu_custom_call.1} parent=1 // pred_fallthru
      _
    // Predicated region
    $region22: #{tpu_custom_call.1} parent=1 // pred_check
      _
    $region23: #{tpu_custom_call.1} parent=1 // pred_check_branch
      %25 = sbr.rel (0) target = $region25
    $region24: #{tpu_custom_call.1} parent=1 // pred_region
      _
    $region25: #{tpu_custom_call.1} parent=1 // pred_fallthru
      _
    %v26 = vld [vmem:[%s0] sm:$0xff]
    %v27 = vld [vmem:[%s0 + $0x8] sm:$0xff]
    %v28 = vld [vmem:[%s0 + $0x10] sm:$0xff]
    %v29 = vld [vmem:[%s0 + $0x18] sm:$0xff]
    %v30 = vld [vmem:[%s0 + $0x20] sm:$0xff]
    %v31 = vld [vmem:[%s0 + $0x28] sm:$0xff]
    %v32 = vld [vmem:[%s0 + $0x30] sm:$0xff]
    %v33 = vld [vmem:[%s0 + $0x38] sm:$0xff]
    %v34 = vlaneseq
    %v35 = vand.u32 %v34, 127
    %36 = vset.pattern.permute.xlu0 0
    %37 = vperm.xlu0 %36, %v26
    %v38 = vpop.permute.xlu0 %37
    %39 = vset.pattern.permute.xlu0 0
    %40 = vperm.xlu0 %39, %v27
    %v41 = vpop.permute.xlu0 %40
    %42 = vset.pattern.permute.xlu0 0
    %43 = vperm.xlu0 %42, %v28
    %v44 = vpop.permute.xlu0 %43
    %45 = vset.pattern.permute.xlu0 0
    %46 = vperm.xlu0 %45, %v29
    %v47 = vpop.permute.xlu0 %46
    %48 = vset.pattern.permute.xlu0 0
    %49 = vperm.xlu0 %48, %v30
    %v50 = vpop.permute.xlu0 %49
    %51 = vset.pattern.permute.xlu0 0
    %52 = vperm.xlu0 %51, %v31
    %v53 = vpop.permute.xlu0 %52
    %54 = vset.pattern.permute.xlu0 0
    %55 = vperm.xlu0 %54, %v32
    %v56 = vpop.permute.xlu0 %55
    %57 = vset.pattern.permute.xlu0 0
    %58 = vperm.xlu0 %57, %v33
    %v59 = vpop.permute.xlu0 %58
    %vm60 = vcmp.eq.s32.totalorder %v35, %v38
    %vm61 = vcmp.eq.s32.totalorder %v35, %v41
    %vm62 = vcmp.eq.s32.totalorder %v35, %v44
    %vm63 = vcmp.eq.s32.totalorder %v35, %v47
    %vm64 = vcmp.eq.s32.totalorder %v35, %v50
    %vm65 = vcmp.eq.s32.totalorder %v35, %v53
    %vm66 = vcmp.eq.s32.totalorder %v35, %v56
    %vm67 = vcmp.eq.s32.totalorder %v35, %v59
    %v68 = vsel %vm60, 1, 0
    %v69 = vsel %vm61, 1, 0
    %v70 = vsel %vm62, 1, 0
    %v71 = vsel %vm63, 1, 0
    %v72 = vsel %vm64, 1, 0
    %v73 = vsel %vm65, 1, 0
    %v74 = vsel %vm66, 1, 0
    %v75 = vsel %vm67, 1, 0
    %v76 = vcvt.s32.f32 %v68
    %v77 = vcvt.s32.f32 %v69
    %v78 = vcvt.s32.f32 %v70
    %v79 = vcvt.s32.f32 %v71
    %v80 = vcvt.s32.f32 %v72
    %v81 = vcvt.s32.f32 %v73
    %v82 = vcvt.s32.f32 %v74
    %v83 = vcvt.s32.f32 %v75
    %v84 = vld [vmem:[%s1] sm:$0xff]
    %v85 = vld [vmem:[%s1 + $0x8] sm:$0xff]
    %vm86 = vcmask 130048
    %v88 = vsel %vm86, %v76, 0
    %v91 = vsel %vm86, %v77, 0
    %v94 = vsel %vm86, %v78, 0
    %v97 = vsel %vm86, %v79, 0
    %v100 = vsel %vm86, %v80, 0
    %v103 = vsel %vm86, %v81, 0
    %v106 = vsel %vm86, %v82, 0
    %v109 = vsel %vm86, %v83, 0
    %111 = vmatprep.subr.mxu0 0.0
    %v112 = vand.u32 %v84, 4294901760
    %113 = vmatpush1.msra.mxu0 %v112
    %114 = vmatprep.subr.mxu0 0.0
    %v115 = vand.u32 %v85, 4294901760
    %116 = vmatpush1.msra.mxu0 %v115
    %117 = vmatprep.subr.mxu0 0.0
    %118 = vmatpush1.msra.mxu0 0.0
    %119 = vmatprep.subr.mxu0 0.0
    %120 = vmatpush1.msra.mxu0 0.0
    %121 = vmatprep.subr.mxu0 0.0
    %122 = vmatpush1.msra.mxu0 0.0
    %123 = vmatprep.subr.mxu0 0.0
    %124 = vmatpush1.msra.mxu0 0.0
    %125 = vmatprep.subr.mxu0 0.0
    %126 = vmatpush1.msra.mxu0 0.0
    %127 = vmatprep.subr.mxu0 0.0
    %128 = vmatpush1.msra.mxu0 0.0
    %129 = vmatprep.subr.mxu0 0.0
    %130 = vmatpush1.msra.mxu0 0.0
    %131 = vmatprep.subr.mxu0 0.0
    %132 = vmatpush1.msra.mxu0 0.0
    %133 = vmatprep.subr.mxu0 0.0
    %134 = vmatpush1.msra.mxu0 0.0
    %135 = vmatprep.subr.mxu0 0.0
    %136 = vmatpush1.msra.mxu0 0.0
    %137 = vmatprep.subr.mxu0 0.0
    %138 = vmatpush1.msra.mxu0 0.0
    %139 = vmatprep.subr.mxu0 0.0
    %140 = vmatpush1.msra.mxu0 0.0
    %141 = vmatprep.subr.mxu0 0.0
    %142 = vmatpush1.msra.mxu0 0.0
    %143 = vmatprep.subr.mxu0 0.0
    %144 = vmatpush1.msra.mxu0 0.0
    %145 = vmatprep.subr.mxu0 0.0
    %146 = vmatpush1.msra.mxu0 0.0
    %147 = vmatprep.subr.mxu0 0.0
    %148 = vmatpush1.msra.mxu0 0.0
    %149 = vmatprep.subr.mxu0 0.0
    %150 = vmatpush1.msra.mxu0 0.0
    %151 = vmatprep.subr.mxu0 0.0
    %152 = vmatpush1.msra.mxu0 0.0
    %153 = vmatprep.subr.mxu0 0.0
    %154 = vmatpush1.msra.mxu0 0.0
    %155 = vmatprep.subr.mxu0 0.0
    %156 = vmatpush1.msra.mxu0 0.0
    %157 = vmatprep.subr.mxu0 0.0
    %158 = vmatpush1.msra.mxu0 0.0
    %159 = vmatprep.subr.mxu0 0.0
    %160 = vmatpush1.msra.mxu0 0.0
    %161 = vmatprep.subr.mxu0 0.0
    %162 = vmatpush1.msra.mxu0 0.0
    %163 = vmatprep.subr.mxu0 0.0
    %164 = vmatpush1.msra.mxu0 0.0
    %165 = vmatprep.subr.mxu0 0.0
    %166 = vmatpush1.msra.mxu0 0.0
    %167 = vmatprep.subr.mxu0 0.0
    %168 = vmatpush1.msra.mxu0 0.0
    %169 = vmatprep.subr.mxu0 0.0
    %170 = vmatpush1.msra.mxu0 0.0
    %171 = vmatprep.subr.mxu0 0.0
    %172 = vmatpush1.msra.mxu0 0.0
    %173 = vmatprep.subr.mxu0 0.0
    %174 = vmatpush1.msra.mxu0 0.0
    %175 = vmatprep.subr.mxu0 0.0
    %176 = vmatpush1.msra.mxu0 0.0
    %177 = vmatprep.mubr.f32.mxu0 0.0
    %v178 = vand.u32 %v88, 4294901760
    %v179 = vsub.f32 %v88, %v178
    %v180 = vand.u32 %v179, 4294901760
    %v181 = vsub.f32 %v179, %v180
    %v182 = vand.u32 %v181, 4294901760
    %183 = vmatmul.mubr.f32.gmra.mrb[0].mxu0 %v182
    %v184 = vpop.f32.mrb[0].mxu0
    %v185 = vadd.f32 0.0, %v184
    %v186 = vpop.f32.mrb[0].mxu0
    %187 = vmatprep.mubr.f32.mxu0 0.0
    %v188 = vand.u32 %v91, 4294901760
    %v189 = vsub.f32 %v91, %v188
    %v190 = vand.u32 %v189, 4294901760
    %v191 = vsub.f32 %v189, %v190
    %v192 = vand.u32 %v191, 4294901760
    %193 = vmatmul.mubr.f32.gmra.mrb[0].mxu0 %v192
    %v194 = vpop.f32.mrb[0].mxu0
    %v195 = vadd.f32 0.0, %v194
    %v196 = vpop.f32.mrb[0].mxu0
    %197 = vmatprep.mubr.f32.mxu0 0.0
    %v198 = vand.u32 %v94, 4294901760
    %v199 = vsub.f32 %v94, %v198
    %v200 = vand.u32 %v199, 4294901760
    %v201 = vsub.f32 %v199, %v200
    %v202 = vand.u32 %v201, 4294901760
    %203 = vmatmul.mubr.f32.gmra.mrb[0].mxu0 %v202
    %v204 = vpop.f32.mrb[0].mxu0
    %v205 = vadd.f32 0.0, %v204
    %v206 = vpop.f32.mrb[0].mxu0
    %207 = vmatprep.mubr.f32.mxu0 0.0
    %v208 = vand.u32 %v97, 4294901760
    %v209 = vsub.f32 %v97, %v208
    %v210 = vand.u32 %v209, 4294901760
    %v211 = vsub.f32 %v209, %v210
    %v212 = vand.u32 %v211, 4294901760
    %213 = vmatmul.mubr.f32.gmra.mrb[0].mxu0 %v212
    %v214 = vpop.f32.mrb[0].mxu0
    %v215 = vadd.f32 0.0, %v214
    %v216 = vpop.f32.mrb[0].mxu0
    %217 = vmatprep.mubr.f32.mxu0 0.0
    %v218 = vand.u32 %v100, 4294901760
    %v219 = vsub.f32 %v100, %v218
    %v220 = vand.u32 %v219, 4294901760
    %v221 = vsub.f32 %v219, %v220
    %v222 = vand.u32 %v221, 4294901760
    %223 = vmatmul.mubr.f32.gmra.mrb[0].mxu0 %v222
    %v224 = vpop.f32.mrb[0].mxu0
    %v225 = vadd.f32 0.0, %v224
    %v226 = vpop.f32.mrb[0].mxu0
    %227 = vmatprep.mubr.f32.mxu0 0.0
    %v228 = vand.u32 %v103, 4294901760
    %v229 = vsub.f32 %v103, %v228
    %v230 = vand.u32 %v229, 4294901760
    %v231 = vsub.f32 %v229, %v230
    %v232 = vand.u32 %v231, 4294901760
    %233 = vmatmul.mubr.f32.gmra.mrb[0].mxu0 %v232
    %v234 = vpop.f32.mrb[0].mxu0
    %v235 = vadd.f32 0.0, %v234
    %v236 = vpop.f32.mrb[0].mxu0
    %237 = vmatprep.mubr.f32.mxu0 0.0
    %v238 = vand.u32 %v106, 4294901760
    %v239 = vsub.f32 %v106, %v238
    %v240 = vand.u32 %v239, 4294901760
    %v241 = vsub.f32 %v239, %v240
    %v242 = vand.u32 %v241, 4294901760
    %243 = vmatmul.mubr.f32.gmra.mrb[0].mxu0 %v242
    %v244 = vpop.f32.mrb[0].mxu0
    %v245 = vadd.f32 0.0, %v244
    %v246 = vpop.f32.mrb[0].mxu0
    %247 = vmatprep.mubr.f32.mxu0 0.0
    %v248 = vand.u32 %v109, 4294901760
    %v249 = vsub.f32 %v109, %v248
    %v250 = vand.u32 %v249, 4294901760
    %v251 = vsub.f32 %v249, %v250
    %v252 = vand.u32 %v251, 4294901760
    %253 = vmatmul.mubr.f32.gmra.mrb[0].mxu0 %v252
    %v254 = vpop.f32.mrb[0].mxu0
    %v255 = vadd.f32 0.0, %v254
    %v256 = vpop.f32.mrb[0].mxu0
    %257 = vdwg.mxu0
    %258 = vmatprep.subr.mxu0 0.0
    %v259 = vand.u32 %v84, 4294901760
    %v260 = vsub.f32 %v84, %v259
    %v261 = vand.u32 %v260, 4294901760
    %v262 = vsub.f32 %v260, %v261
    %v263 = vand.u32 %v262, 4294901760
    %264 = vmatpush1.msra.mxu0 %v263
    %265 = vmatprep.subr.mxu0 0.0
    %v266 = vand.u32 %v85, 4294901760
    %v267 = vsub.f32 %v85, %v266
    %v268 = vand.u32 %v267, 4294901760
    %v269 = vsub.f32 %v267, %v268
    %v270 = vand.u32 %v269, 4294901760
    %271 = vmatpush1.msra.mxu0 %v270
    %272 = vmatprep.subr.mxu0 0.0
    %273 = vmatpush1.msra.mxu0 0.0
    %274 = vmatprep.subr.mxu0 0.0
    %275 = vmatpush1.msra.mxu0 0.0
    %276 = vmatprep.subr.mxu0 0.0
    %277 = vmatpush1.msra.mxu0 0.0
    %278 = vmatprep.subr.mxu0 0.0
    %279 = vmatpush1.msra.mxu0 0.0
    %280 = vmatprep.subr.mxu0 0.0
    %281 = vmatpush1.msra.mxu0 0.0
    %282 = vmatprep.subr.mxu0 0.0
    %283 = vmatpush1.msra.mxu0 0.0
    %284 = vmatprep.subr.mxu0 0.0
    %285 = vmatpush1.msra.mxu0 0.0
    %286 = vmatprep.subr.mxu0 0.0
    %287 = vmatpush1.msra.mxu0 0.0
    %288 = vmatprep.subr.mxu0 0.0
    %289 = vmatpush1.msra.mxu0 0.0
    %290 = vmatprep.subr.mxu0 0.0
    %291 = vmatpush1.msra.mxu0 0.0
    %292 = vmatprep.subr.mxu0 0.0
    %293 = vmatpush1.msra.mxu0 0.0
    %294 = vmatprep.subr.mxu0 0.0
    %295 = vmatpush1.msra.mxu0 0.0
    %296 = vmatprep.subr.mxu0 0.0
    %297 = vmatpush1.msra.mxu0 0.0
    %298 = vmatprep.subr.mxu0 0.0
    %299 = vmatpush1.msra.mxu0 0.0
    %300 = vmatprep.subr.mxu0 0.0
    %301 = vmatpush1.msra.mxu0 0.0
    %302 = vmatprep.subr.mxu0 0.0
    %303 = vmatpush1.msra.mxu0 0.0
    %304 = vmatprep.subr.mxu0 0.0
    %305 = vmatpush1.msra.mxu0 0.0
    %306 = vmatprep.subr.mxu0 0.0
    %307 = vmatpush1.msra.mxu0 0.0
    %308 = vmatprep.subr.mxu0 0.0
    %309 = vmatpush1.msra.mxu0 0.0
    %310 = vmatprep.subr.mxu0 0.0
    %311 = vmatpush1.msra.mxu0 0.0
    %312 = vmatprep.subr.mxu0 0.0
    %313 = vmatpush1.msra.mxu0 0.0
    %314 = vmatprep.subr.mxu0 0.0
    %315 = vmatpush1.msra.mxu0 0.0
    %316 = vmatprep.subr.mxu0 0.0
    %317 = vmatpush1.msra.mxu0 0.0
    %318 = vmatprep.subr.mxu0 0.0
    %319 = vmatpush1.msra.mxu0 0.0
    %320 = vmatprep.subr.mxu0 0.0
    %321 = vmatpush1.msra.mxu0 0.0
    %322 = vmatprep.subr.mxu0 0.0
    %323 = vmatpush1.msra.mxu0 0.0
    %324 = vmatprep.subr.mxu0 0.0
    %325 = vmatpush1.msra.mxu0 0.0
    %326 = vmatprep.subr.mxu0 0.0
    %327 = vmatpush1.msra.mxu0 0.0
    %328 = vmatprep.subr.mxu0 0.0
    %329 = vmatpush1.msra.mxu0 0.0
    %330 = vmatprep.subr.mxu0 0.0
    %331 = vmatpush1.msra.mxu0 0.0
    %332 = vmatprep.mubr.f32.mxu0 0.0
    %v333 = vand.u32 %v88, 4294901760
    %334 = vmatmul.mubr.f32.gmra.mrb[0].mxu0 %v333
    %v335 = vpop.f32.mrb[0].mxu0
    %v336 = vadd.f32 %v185, %v335
    %v337 = vpop.f32.mrb[0].mxu0
    %338 = vmatprep.mubr.f32.mxu0 0.0
    %v339 = vand.u32 %v91, 4294901760
    %340 = vmatmul.mubr.f32.gmra.mrb[0].mxu0 %v339
    %v341 = vpop.f32.mrb[0].mxu0
    %v342 = vadd.f32 %v195, %v341
    %v343 = vpop.f32.mrb[0].mxu0
    %344 = vmatprep.mubr.f32.mxu0 0.0
    %v345 = vand.u32 %v94, 4294901760
    %346 = vmatmul.mubr.f32.gmra.mrb[0].mxu0 %v345
    %v347 = vpop.f32.mrb[0].mxu0
    %v348 = vadd.f32 %v205, %v347
    %v349 = vpop.f32.mrb[0].mxu0
    %350 = vmatprep.mubr.f32.mxu0 0.0
    %v351 = vand.u32 %v97, 4294901760
    %352 = vmatmul.mubr.f32.gmra.mrb[0].mxu0 %v351
    %v353 = vpop.f32.mrb[0].mxu0
    %v354 = vadd.f32 %v215, %v353
    %v355 = vpop.f32.mrb[0].mxu0
    %356 = vmatprep.mubr.f32.mxu0 0.0
    %v357 = vand.u32 %v100, 4294901760
    %358 = vmatmul.mubr.f32.gmra.mrb[0].mxu0 %v357
    %v359 = vpop.f32.mrb[0].mxu0
    %v360 = vadd.f32 %v225, %v359
    %v361 = vpop.f32.mrb[0].mxu0
    %362 = vmatprep.mubr.f32.mxu0 0.0
    %v363 = vand.u32 %v103, 4294901760
    %364 = vmatmul.mubr.f32.gmra.mrb[0].mxu0 %v363
    %v365 = vpop.f32.mrb[0].mxu0
    %v366 = vadd.f32 %v235, %v365
    %v367 = vpop.f32.mrb[0].mxu0
    %368 = vmatprep.mubr.f32.mxu0 0.0
    %v369 = vand.u32 %v106, 4294901760
    %370 = vmatmul.mubr.f32.gmra.mrb[0].mxu0 %v369
    %v371 = vpop.f32.mrb[0].mxu0
    %v372 = vadd.f32 %v245, %v371
    %v373 = vpop.f32.mrb[0].mxu0
    %374 = vmatprep.mubr.f32.mxu0 0.0
    %v375 = vand.u32 %v109, 4294901760
    %376 = vmatmul.mubr.f32.gmra.mrb[0].mxu0 %v375
    %v377 = vpop.f32.mrb[0].mxu0
    %v378 = vadd.f32 %v255, %v377
    %v379 = vpop.f32.mrb[0].mxu0
    %380 = vdwg.mxu0
    %381 = vmatprep.subr.mxu0 0.0
    %v382 = vand.u32 %v84, 4294901760
    %v383 = vsub.f32 %v84, %v382
    %384 = vmatpush1.msra.mxu0 %v383
    %385 = vmatprep.subr.mxu0 0.0
    %v386 = vand.u32 %v85, 4294901760
    %v387 = vsub.f32 %v85, %v386
    %388 = vmatpush1.msra.mxu0 %v387
    %389 = vmatprep.subr.mxu0 0.0
    %390 = vmatpush1.msra.mxu0 0.0
    %391 = vmatprep.subr.mxu0 0.0
    %392 = vmatpush1.msra.mxu0 0.0
    %393 = vmatprep.subr.mxu0 0.0
    %394 = vmatpush1.msra.mxu0 0.0
    %395 = vmatprep.subr.mxu0 0.0
    %396 = vmatpush1.msra.mxu0 0.0
    %397 = vmatprep.subr.mxu0 0.0
    %398 = vmatpush1.msra.mxu0 0.0
    %399 = vmatprep.subr.mxu0 0.0
    %400 = vmatpush1.msra.mxu0 0.0
    %401 = vmatprep.subr.mxu0 0.0
    %402 = vmatpush1.msra.mxu0 0.0
    %403 = vmatprep.subr.mxu0 0.0
    %404 = vmatpush1.msra.mxu0 0.0
    %405 = vmatprep.subr.mxu0 0.0
    %406 = vmatpush1.msra.mxu0 0.0
    %407 = vmatprep.subr.mxu0 0.0
    %408 = vmatpush1.msra.mxu0 0.0
    %409 = vmatprep.subr.mxu0 0.0
    %410 = vmatpush1.msra.mxu0 0.0
    %411 = vmatprep.subr.mxu0 0.0
    %412 = vmatpush1.msra.mxu0 0.0
    %413 = vmatprep.subr.mxu0 0.0
    %414 = vmatpush1.msra.mxu0 0.0
    %415 = vmatprep.subr.mxu0 0.0
    %416 = vmatpush1.msra.mxu0 0.0
    %417 = vmatprep.subr.mxu0 0.0
    %418 = vmatpush1.msra.mxu0 0.0
    %419 = vmatprep.subr.mxu0 0.0
    %420 = vmatpush1.msra.mxu0 0.0
    %421 = vmatprep.subr.mxu0 0.0
    %422 = vmatpush1.msra.mxu0 0.0
    %423 = vmatprep.subr.mxu0 0.0
    %424 = vmatpush1.msra.mxu0 0.0
    %425 = vmatprep.subr.mxu0 0.0
    %426 = vmatpush1.msra.mxu0 0.0
    %427 = vmatprep.subr.mxu0 0.0
    %428 = vmatpush1.msra.mxu0 0.0
    %429 = vmatprep.subr.mxu0 0.0
    %430 = vmatpush1.msra.mxu0 0.0
    %431 = vmatprep.subr.mxu0 0.0
    %432 = vmatpush1.msra.mxu0 0.0
    %433 = vmatprep.subr.mxu0 0.0
    %434 = vmatpush1.msra.mxu0 0.0
    %435 = vmatprep.subr.mxu0 0.0
    %436 = vmatpush1.msra.mxu0 0.0
    %437 = vmatprep.subr.mxu0 0.0
    %438 = vmatpush1.msra.mxu0 0.0
    %439 = vmatprep.subr.mxu0 0.0
    %440 = vmatpush1.msra.mxu0 0.0
    %441 = vmatprep.subr.mxu0 0.0
    %442 = vmatpush1.msra.mxu0 0.0
    %443 = vmatprep.subr.mxu0 0.0
    %444 = vmatpush1.msra.mxu0 0.0
    %445 = vmatprep.subr.mxu0 0.0
    %446 = vmatpush1.msra.mxu0 0.0
    %447 = vmatprep.subr.mxu0 0.0
    %448 = vmatpush1.msra.mxu0 0.0
    %449 = vmatprep.mubr.f32.mxu0 0.0
    %v450 = vand.u32 %v88, 4294901760
    %v451 = vsub.f32 %v88, %v450
    %452 = vmatmul.mubr.f32.gmra.mrb[0].mxu0 %v451
    %v453 = vpop.f32.mrb[0].mxu0
    %v454 = vadd.f32 %v336, %v453
    %v455 = vpop.f32.mrb[0].mxu0
    %456 = vmatprep.mubr.f32.mxu0 0.0
    %v457 = vand.u32 %v91, 4294901760
    %v458 = vsub.f32 %v91, %v457
    %459 = vmatmul.mubr.f32.gmra.mrb[0].mxu0 %v458
    %v460 = vpop.f32.mrb[0].mxu0
    %v461 = vadd.f32 %v342, %v460
    %v462 = vpop.f32.mrb[0].mxu0
    %463 = vmatprep.mubr.f32.mxu0 0.0
    %v464 = vand.u32 %v94, 4294901760
    %v465 = vsub.f32 %v94, %v464
    %466 = vmatmul.mubr.f32.gmra.mrb[0].mxu0 %v465
    %v467 = vpop.f32.mrb[0].mxu0
    %v468 = vadd.f32 %v348, %v467
    %v469 = vpop.f32.mrb[0].mxu0
    %470 = vmatprep.mubr.f32.mxu0 0.0
    %v471 = vand.u32 %v97, 4294901760
    %v472 = vsub.f32 %v97, %v471
    %473 = vmatmul.mubr.f32.gmra.mrb[0].mxu0 %v472
    %v474 = vpop.f32.mrb[0].mxu0
    %v475 = vadd.f32 %v354, %v474
    %v476 = vpop.f32.mrb[0].mxu0
    %477 = vmatprep.mubr.f32.mxu0 0.0
    %v478 = vand.u32 %v100, 4294901760
    %v479 = vsub.f32 %v100, %v478
    %480 = vmatmul.mubr.f32.gmra.mrb[0].mxu0 %v479
    %v481 = vpop.f32.mrb[0].mxu0
    %v482 = vadd.f32 %v360, %v481
    %v483 = vpop.f32.mrb[0].mxu0
    %484 = vmatprep.mubr.f32.mxu0 0.0
    %v485 = vand.u32 %v103, 4294901760
    %v486 = vsub.f32 %v103, %v485
    %487 = vmatmul.mubr.f32.gmra.mrb[0].mxu0 %v486
    %v488 = vpop.f32.mrb[0].mxu0
    %v489 = vadd.f32 %v366, %v488
    %v490 = vpop.f32.mrb[0].mxu0
    %491 = vmatprep.mubr.f32.mxu0 0.0
    %v492 = vand.u32 %v106, 4294901760
    %v493 = vsub.f32 %v106, %v492
    %494 = vmatmul.mubr.f32.gmra.mrb[0].mxu0 %v493
    %v495 = vpop.f32.mrb[0].mxu0
    %v496 = vadd.f32 %v372, %v495
    %v497 = vpop.f32.mrb[0].mxu0
    %498 = vmatprep.mubr.f32.mxu0 0.0
    %v499 = vand.u32 %v109, 4294901760
    %v500 = vsub.f32 %v109, %v499
    %501 = vmatmul.mubr.f32.gmra.mrb[0].mxu0 %v500
    %v502 = vpop.f32.mrb[0].mxu0
    %v503 = vadd.f32 %v378, %v502
    %v504 = vpop.f32.mrb[0].mxu0
    %505 = vdwg.mxu0
    %506 = vmatprep.subr.mxu0 0.0
    %v507 = vand.u32 %v84, 4294901760
    %508 = vmatpush1.msra.mxu0 %v507
    %509 = vmatprep.subr.mxu0 0.0
    %v510 = vand.u32 %v85, 4294901760
    %511 = vmatpush1.msra.mxu0 %v510
    %512 = vmatprep.subr.mxu0 0.0
    %513 = vmatpush1.msra.mxu0 0.0
    %514 = vmatprep.subr.mxu0 0.0
    %515 = vmatpush1.msra.mxu0 0.0
    %516 = vmatprep.subr.mxu0 0.0
    %517 = vmatpush1.msra.mxu0 0.0
    %518 = vmatprep.subr.mxu0 0.0
    %519 = vmatpush1.msra.mxu0 0.0
    %520 = vmatprep.subr.mxu0 0.0
    %521 = vmatpush1.msra.mxu0 0.0
    %522 = vmatprep.subr.mxu0 0.0
    %523 = vmatpush1.msra.mxu0 0.0
    %524 = vmatprep.subr.mxu0 0.0
    %525 = vmatpush1.msra.mxu0 0.0
    %526 = vmatprep.subr.mxu0 0.0
    %527 = vmatpush1.msra.mxu0 0.0
    %528 = vmatprep.subr.mxu0 0.0
    %529 = vmatpush1.msra.mxu0 0.0
    %530 = vmatprep.subr.mxu0 0.0
    %531 = vmatpush1.msra.mxu0 0.0
    %532 = vmatprep.subr.mxu0 0.0
    %533 = vmatpush1.msra.mxu0 0.0
    %534 = vmatprep.subr.mxu0 0.0
    %535 = vmatpush1.msra.mxu0 0.0
    %536 = vmatprep.subr.mxu0 0.0
    %537 = vmatpush1.msra.mxu0 0.0
    %538 = vmatprep.subr.mxu0 0.0
    %539 = vmatpush1.msra.mxu0 0.0
    %540 = vmatprep.subr.mxu0 0.0
    %541 = vmatpush1.msra.mxu0 0.0
    %542 = vmatprep.subr.mxu0 0.0
    %543 = vmatpush1.msra.mxu0 0.0
    %544 = vmatprep.subr.mxu0 0.0
    %545 = vmatpush1.msra.mxu0 0.0
    %546 = vmatprep.subr.mxu0 0.0
    %547 = vmatpush1.msra.mxu0 0.0
    %548 = vmatprep.subr.mxu0 0.0
    %549 = vmatpush1.msra.mxu0 0.0
    %550 = vmatprep.subr.mxu0 0.0
    %551 = vmatpush1.msra.mxu0 0.0
    %552 = vmatprep.subr.mxu0 0.0
    %553 = vmatpush1.msra.mxu0 0.0
    %554 = vmatprep.subr.mxu0 0.0
    %555 = vmatpush1.msra.mxu0 0.0
    %556 = vmatprep.subr.mxu0 0.0
    %557 = vmatpush1.msra.mxu0 0.0
    %558 = vmatprep.subr.mxu0 0.0
    %559 = vmatpush1.msra.mxu0 0.0
    %560 = vmatprep.subr.mxu0 0.0
    %561 = vmatpush1.msra.mxu0 0.0
    %562 = vmatprep.subr.mxu0 0.0
    %563 = vmatpush1.msra.mxu0 0.0
    %564 = vmatprep.subr.mxu0 0.0
    %565 = vmatpush1.msra.mxu0 0.0
    %566 = vmatprep.subr.mxu0 0.0
    %567 = vmatpush1.msra.mxu0 0.0
    %568 = vmatprep.subr.mxu0 0.0
    %569 = vmatpush1.msra.mxu0 0.0
    %570 = vmatprep.subr.mxu0 0.0
    %571 = vmatpush1.msra.mxu0 0.0
    %572 = vmatprep.mubr.f32.mxu0 0.0
    %v573 = vand.u32 %v88, 4294901760
    %v574 = vsub.f32 %v88, %v573
    %v575 = vand.u32 %v574, 4294901760
    %576 = vmatmul.mubr.f32.gmra.mrb[0].mxu0 %v575
    %v577 = vpop.f32.mrb[0].mxu0
    %v578 = vadd.f32 %v454, %v577
    %v579 = vpop.f32.mrb[0].mxu0
    %580 = vmatprep.mubr.f32.mxu0 0.0
    %v581 = vand.u32 %v91, 4294901760
    %v582 = vsub.f32 %v91, %v581
    %v583 = vand.u32 %v582, 4294901760
    %584 = vmatmul.mubr.f32.gmra.mrb[0].mxu0 %v583
    %v585 = vpop.f32.mrb[0].mxu0
    %v586 = vadd.f32 %v461, %v585
    %v587 = vpop.f32.mrb[0].mxu0
    %588 = vmatprep.mubr.f32.mxu0 0.0
    %v589 = vand.u32 %v94, 4294901760
    %v590 = vsub.f32 %v94, %v589
    %v591 = vand.u32 %v590, 4294901760
    %592 = vmatmul.mubr.f32.gmra.mrb[0].mxu0 %v591
    %v593 = vpop.f32.mrb[0].mxu0
    %v594 = vadd.f32 %v468, %v593
    %v595 = vpop.f32.mrb[0].mxu0
    %596 = vmatprep.mubr.f32.mxu0 0.0
    %v597 = vand.u32 %v97, 4294901760
    %v598 = vsub.f32 %v97, %v597
    %v599 = vand.u32 %v598, 4294901760
    %600 = vmatmul.mubr.f32.gmra.mrb[0].mxu0 %v599
    %v601 = vpop.f32.mrb[0].mxu0
    %v602 = vadd.f32 %v475, %v601
    %v603 = vpop.f32.mrb[0].mxu0
    %604 = vmatprep.mubr.f32.mxu0 0.0
    %v605 = vand.u32 %v100, 4294901760
    %v606 = vsub.f32 %v100, %v605
    %v607 = vand.u32 %v606, 4294901760
    %608 = vmatmul.mubr.f32.gmra.mrb[0].mxu0 %v607
    %v609 = vpop.f32.mrb[0].mxu0
    %v610 = vadd.f32 %v482, %v609
    %v611 = vpop.f32.mrb[0].mxu0
    %612 = vmatprep.mubr.f32.mxu0 0.0
    %v613 = vand.u32 %v103, 4294901760
    %v614 = vsub.f32 %v103, %v613
    %v615 = vand.u32 %v614, 4294901760
    %616 = vmatmul.mubr.f32.gmra.mrb[0].mxu0 %v615
    %v617 = vpop.f32.mrb[0].mxu0
    %v618 = vadd.f32 %v489, %v617
    %v619 = vpop.f32.mrb[0].mxu0
    %620 = vmatprep.mubr.f32.mxu0 0.0
    %v621 = vand.u32 %v106, 4294901760
    %v622 = vsub.f32 %v106, %v621
    %v623 = vand.u32 %v622, 4294901760
    %624 = vmatmul.mubr.f32.gmra.mrb[0].mxu0 %v623
    %v625 = vpop.f32.mrb[0].mxu0
    %v626 = vadd.f32 %v496, %v625
    %v627 = vpop.f32.mrb[0].mxu0
    %628 = vmatprep.mubr.f32.mxu0 0.0
    %v629 = vand.u32 %v109, 4294901760
    %v630 = vsub.f32 %v109, %v629
    %v631 = vand.u32 %v630, 4294901760
    %632 = vmatmul.mubr.f32.gmra.mrb[0].mxu0 %v631
    %v633 = vpop.f32.mrb[0].mxu0
    %v634 = vadd.f32 %v503, %v633
    %v635 = vpop.f32.mrb[0].mxu0
    %636 = vdwg.mxu0
    %637 = vmatprep.subr.mxu0 0.0
    %v638 = vand.u32 %v84, 4294901760
    %v639 = vsub.f32 %v84, %v638
    %v640 = vand.u32 %v639, 4294901760
    %641 = vmatpush1.msra.mxu0 %v640
    %642 = vmatprep.subr.mxu0 0.0
    %v643 = vand.u32 %v85, 4294901760
    %v644 = vsub.f32 %v85, %v643
    %v645 = vand.u32 %v644, 4294901760
    %646 = vmatpush1.msra.mxu0 %v645
    %647 = vmatprep.subr.mxu0 0.0
    %648 = vmatpush1.msra.mxu0 0.0
    %649 = vmatprep.subr.mxu0 0.0
    %650 = vmatpush1.msra.mxu0 0.0
    %651 = vmatprep.subr.mxu0 0.0
    %652 = vmatpush1.msra.mxu0 0.0
    %653 = vmatprep.subr.mxu0 0.0
    %654 = vmatpush1.msra.mxu0 0.0
    %655 = vmatprep.subr.mxu0 0.0
    %656 = vmatpush1.msra.mxu0 0.0
    %657 = vmatprep.subr.mxu0 0.0
    %658 = vmatpush1.msra.mxu0 0.0
    %659 = vmatprep.subr.mxu0 0.0
    %660 = vmatpush1.msra.mxu0 0.0
    %661 = vmatprep.subr.mxu0 0.0
    %662 = vmatpush1.msra.mxu0 0.0
    %663 = vmatprep.subr.mxu0 0.0
    %664 = vmatpush1.msra.mxu0 0.0
    %665 = vmatprep.subr.mxu0 0.0
    %666 = vmatpush1.msra.mxu0 0.0
    %667 = vmatprep.subr.mxu0 0.0
    %668 = vmatpush1.msra.mxu0 0.0
    %669 = vmatprep.subr.mxu0 0.0
    %670 = vmatpush1.msra.mxu0 0.0
    %671 = vmatprep.subr.mxu0 0.0
    %672 = vmatpush1.msra.mxu0 0.0
    %673 = vmatprep.subr.mxu0 0.0
    %674 = vmatpush1.msra.mxu0 0.0
    %675 = vmatprep.subr.mxu0 0.0
    %676 = vmatpush1.msra.mxu0 0.0
    %677 = vmatprep.subr.mxu0 0.0
    %678 = vmatpush1.msra.mxu0 0.0
    %679 = vmatprep.subr.mxu0 0.0
    %680 = vmatpush1.msra.mxu0 0.0
    %681 = vmatprep.subr.mxu0 0.0
    %682 = vmatpush1.msra.mxu0 0.0
    %683 = vmatprep.subr.mxu0 0.0
    %684 = vmatpush1.msra.mxu0 0.0
    %685 = vmatprep.subr.mxu0 0.0
    %686 = vmatpush1.msra.mxu0 0.0
    %687 = vmatprep.subr.mxu0 0.0
    %688 = vmatpush1.msra.mxu0 0.0
    %689 = vmatprep.subr.mxu0 0.0
    %690 = vmatpush1.msra.mxu0 0.0
    %691 = vmatprep.subr.mxu0 0.0
    %692 = vmatpush1.msra.mxu0 0.0
    %693 = vmatprep.subr.mxu0 0.0
    %694 = vmatpush1.msra.mxu0 0.0
    %695 = vmatprep.subr.mxu0 0.0
    %696 = vmatpush1.msra.mxu0 0.0
    %697 = vmatprep.subr.mxu0 0.0
    %698 = vmatpush1.msra.mxu0 0.0
    %699 = vmatprep.subr.mxu0 0.0
    %700 = vmatpush1.msra.mxu0 0.0
    %701 = vmatprep.subr.mxu0 0.0
    %702 = vmatpush1.msra.mxu0 0.0
    %703 = vmatprep.subr.mxu0 0.0
    %704 = vmatpush1.msra.mxu0 0.0
    %705 = vmatprep.subr.mxu0 0.0
    %706 = vmatpush1.msra.mxu0 0.0
    %707 = vmatprep.mubr.f32.mxu0 0.0
    %v708 = vand.u32 %v88, 4294901760
    %709 = vmatmul.mubr.f32.gmra.mrb[0].mxu0 %v708
    %v710 = vpop.f32.mrb[0].mxu0
    %v711 = vadd.f32 %v578, %v710
    %v712 = vpop.f32.mrb[0].mxu0
    %713 = vmatprep.mubr.f32.mxu0 0.0
    %v714 = vand.u32 %v91, 4294901760
    %715 = vmatmul.mubr.f32.gmra.mrb[0].mxu0 %v714
    %v716 = vpop.f32.mrb[0].mxu0
    %v717 = vadd.f32 %v586, %v716
    %v718 = vpop.f32.mrb[0].mxu0
    %719 = vmatprep.mubr.f32.mxu0 0.0
    %v720 = vand.u32 %v94, 4294901760
    %721 = vmatmul.mubr.f32.gmra.mrb[0].mxu0 %v720
    %v722 = vpop.f32.mrb[0].mxu0
    %v723 = vadd.f32 %v594, %v722
    %v724 = vpop.f32.mrb[0].mxu0
    %725 = vmatprep.mubr.f32.mxu0 0.0
    %v726 = vand.u32 %v97, 4294901760
    %727 = vmatmul.mubr.f32.gmra.mrb[0].mxu0 %v726
    %v728 = vpop.f32.mrb[0].mxu0
    %v729 = vadd.f32 %v602, %v728
    %v730 = vpop.f32.mrb[0].mxu0
    %731 = vmatprep.mubr.f32.mxu0 0.0
    %v732 = vand.u32 %v100, 4294901760
    %733 = vmatmul.mubr.f32.gmra.mrb[0].mxu0 %v732
    %v734 = vpop.f32.mrb[0].mxu0
    %v735 = vadd.f32 %v610, %v734
    %v736 = vpop.f32.mrb[0].mxu0
    %737 = vmatprep.mubr.f32.mxu0 0.0
    %v738 = vand.u32 %v103, 4294901760
    %739 = vmatmul.mubr.f32.gmra.mrb[0].mxu0 %v738
    %v740 = vpop.f32.mrb[0].mxu0
    %v741 = vadd.f32 %v618, %v740
    %v742 = vpop.f32.mrb[0].mxu0
    %743 = vmatprep.mubr.f32.mxu0 0.0
    %v744 = vand.u32 %v106, 4294901760
    %745 = vmatmul.mubr.f32.gmra.mrb[0].mxu0 %v744
    %v746 = vpop.f32.mrb[0].mxu0
    %v747 = vadd.f32 %v626, %v746
    %v748 = vpop.f32.mrb[0].mxu0
    %749 = vmatprep.mubr.f32.mxu0 0.0
    %v750 = vand.u32 %v109, 4294901760
    %751 = vmatmul.mubr.f32.gmra.mrb[0].mxu0 %v750
    %v752 = vpop.f32.mrb[0].mxu0
    %v753 = vadd.f32 %v634, %v752
    %v754 = vpop.f32.mrb[0].mxu0
    %755 = vdwg.mxu0
    %756 = vmatprep.subr.mxu0 0.0
    %v757 = vand.u32 %v84, 4294901760
    %758 = vmatpush1.msra.mxu0 %v757
    %759 = vmatprep.subr.mxu0 0.0
    %v760 = vand.u32 %v85, 4294901760
    %761 = vmatpush1.msra.mxu0 %v760
    %762 = vmatprep.subr.mxu0 0.0
    %763 = vmatpush1.msra.mxu0 0.0
    %764 = vmatprep.subr.mxu0 0.0
    %765 = vmatpush1.msra.mxu0 0.0
    %766 = vmatprep.subr.mxu0 0.0
    %767 = vmatpush1.msra.mxu0 0.0
    %768 = vmatprep.subr.mxu0 0.0
    %769 = vmatpush1.msra.mxu0 0.0
    %770 = vmatprep.subr.mxu0 0.0
    %771 = vmatpush1.msra.mxu0 0.0
    %772 = vmatprep.subr.mxu0 0.0
    %773 = vmatpush1.msra.mxu0 0.0
    %774 = vmatprep.subr.mxu0 0.0
    %775 = vmatpush1.msra.mxu0 0.0
    %776 = vmatprep.subr.mxu0 0.0
    %777 = vmatpush1.msra.mxu0 0.0
    %778 = vmatprep.subr.mxu0 0.0
    %779 = vmatpush1.msra.mxu0 0.0
    %780 = vmatprep.subr.mxu0 0.0
    %781 = vmatpush1.msra.mxu0 0.0
    %782 = vmatprep.subr.mxu0 0.0
    %783 = vmatpush1.msra.mxu0 0.0
    %784 = vmatprep.subr.mxu0 0.0
    %785 = vmatpush1.msra.mxu0 0.0
    %786 = vmatprep.subr.mxu0 0.0
    %787 = vmatpush1.msra.mxu0 0.0
    %788 = vmatprep.subr.mxu0 0.0
    %789 = vmatpush1.msra.mxu0 0.0
    %790 = vmatprep.subr.mxu0 0.0
    %791 = vmatpush1.msra.mxu0 0.0
    %792 = vmatprep.subr.mxu0 0.0
    %793 = vmatpush1.msra.mxu0 0.0
    %794 = vmatprep.subr.mxu0 0.0
    %795 = vmatpush1.msra.mxu0 0.0
    %796 = vmatprep.subr.mxu0 0.0
    %797 = vmatpush1.msra.mxu0 0.0
    %798 = vmatprep.subr.mxu0 0.0
    %799 = vmatpush1.msra.mxu0 0.0
    %800 = vmatprep.subr.mxu0 0.0
    %801 = vmatpush1.msra.mxu0 0.0
    %802 = vmatprep.subr.mxu0 0.0
    %803 = vmatpush1.msra.mxu0 0.0
    %804 = vmatprep.subr.mxu0 0.0
    %805 = vmatpush1.msra.mxu0 0.0
    %806 = vmatprep.subr.mxu0 0.0
    %807 = vmatpush1.msra.mxu0 0.0
    %808 = vmatprep.subr.mxu0 0.0
    %809 = vmatpush1.msra.mxu0 0.0
    %810 = vmatprep.subr.mxu0 0.0
    %811 = vmatpush1.msra.mxu0 0.0
    %812 = vmatprep.subr.mxu0 0.0
    %813 = vmatpush1.msra.mxu0 0.0
    %814 = vmatprep.subr.mxu0 0.0
    %815 = vmatpush1.msra.mxu0 0.0
    %816 = vmatprep.subr.mxu0 0.0
    %817 = vmatpush1.msra.mxu0 0.0
    %818 = vmatprep.subr.mxu0 0.0
    %819 = vmatpush1.msra.mxu0 0.0
    %820 = vmatprep.subr.mxu0 0.0
    %821 = vmatpush1.msra.mxu0 0.0
    %822 = vmatprep.mubr.f32.mxu0 0.0
    %v823 = vand.u32 %v88, 4294901760
    %824 = vmatmul.mubr.f32.gmra.mrb[0].mxu0 %v823
    %v825 = vpop.f32.mrb[0].mxu0
    %v826 = vadd.f32 %v711, %v825
    %v827 = vpop.f32.mrb[0].mxu0
    %828 = vmatprep.mubr.f32.mxu0 0.0
    %v829 = vand.u32 %v91, 4294901760
    %830 = vmatmul.mubr.f32.gmra.mrb[0].mxu0 %v829
    %v831 = vpop.f32.mrb[0].mxu0
    %v832 = vadd.f32 %v717, %v831
    %v833 = vpop.f32.mrb[0].mxu0
    %834 = vmatprep.mubr.f32.mxu0 0.0
    %v835 = vand.u32 %v94, 4294901760
    %836 = vmatmul.mubr.f32.gmra.mrb[0].mxu0 %v835
    %v837 = vpop.f32.mrb[0].mxu0
    %v838 = vadd.f32 %v723, %v837
    %v839 = vpop.f32.mrb[0].mxu0
    %840 = vmatprep.mubr.f32.mxu0 0.0
    %v841 = vand.u32 %v97, 4294901760
    %842 = vmatmul.mubr.f32.gmra.mrb[0].mxu0 %v841
    %v843 = vpop.f32.mrb[0].mxu0
    %v844 = vadd.f32 %v729, %v843
    %v845 = vpop.f32.mrb[0].mxu0
    %846 = vmatprep.mubr.f32.mxu0 0.0
    %v847 = vand.u32 %v100, 4294901760
    %848 = vmatmul.mubr.f32.gmra.mrb[0].mxu0 %v847
    %v849 = vpop.f32.mrb[0].mxu0
    %v850 = vadd.f32 %v735, %v849
    %v851 = vpop.f32.mrb[0].mxu0
    %852 = vmatprep.mubr.f32.mxu0 0.0
    %v853 = vand.u32 %v103, 4294901760
    %854 = vmatmul.mubr.f32.gmra.mrb[0].mxu0 %v853
    %v855 = vpop.f32.mrb[0].mxu0
    %v856 = vadd.f32 %v741, %v855
    %v857 = vpop.f32.mrb[0].mxu0
    %858 = vmatprep.mubr.f32.mxu0 0.0
    %v859 = vand.u32 %v106, 4294901760
    %860 = vmatmul.mubr.f32.gmra.mrb[0].mxu0 %v859
    %v861 = vpop.f32.mrb[0].mxu0
    %v862 = vadd.f32 %v747, %v861
    %v863 = vpop.f32.mrb[0].mxu0
    %864 = vmatprep.mubr.f32.mxu0 0.0
    %v865 = vand.u32 %v109, 4294901760
    %866 = vmatmul.mubr.f32.gmra.mrb[0].mxu0 %v865
    %v867 = vpop.f32.mrb[0].mxu0
    %v868 = vadd.f32 %v753, %v867
    %v869 = vpop.f32.mrb[0].mxu0
    %870 = vdwg.mxu0
    %v871 = vld [vmem:[%s2] sm:$0xff]
    %v872 = vld [vmem:[%s2 + $0x8] sm:$0xff]
    %v873 = vld [vmem:[%s2 + $0x10] sm:$0xff]
    %v874 = vld [vmem:[%s2 + $0x18] sm:$0xff]
    %v875 = vld [vmem:[%s3] sm:$0x1]
    %v877 = vlaneseq
    %v878 = vshrl.u32 %v877, 7
    %v879 = vsub.s32 0, %v878
    %v880 = vrot.slane %v875, %v879
    %vm881 = vcmask 261120
    %v883 = vsel %vm881, 0.0, 0
    %885 = vmatprep.subr.mxu0 0.0
    %886 = vmatpush1.msra.mxu0 %v871
    %887 = vmatprep.subr.mxu0 0.0
    %888 = vmatpush1.msra.mxu0 %v872
    %889 = vmatprep.subr.mxu0 0.0
    %890 = vmatpush1.msra.mxu0 %v873
    %891 = vmatprep.subr.mxu0 0.0
    %892 = vmatpush1.msra.mxu0 %v874
    %893 = vmatprep.subr.mxu0 0.0
    %894 = vmatpush1.msra.mxu0 0.0
    %895 = vmatprep.subr.mxu0 0.0
    %896 = vmatpush1.msra.mxu0 0.0
    %897 = vmatprep.subr.mxu0 0.0
    %898 = vmatpush1.msra.mxu0 0.0
    %899 = vmatprep.subr.mxu0 0.0
    %900 = vmatpush1.msra.mxu0 0.0
    %901 = vmatprep.subr.mxu0 0.0
    %902 = vmatpush1.msra.mxu0 0.0
    %903 = vmatprep.subr.mxu0 0.0
    %904 = vmatpush1.msra.mxu0 0.0
    %905 = vmatprep.subr.mxu0 0.0
    %906 = vmatpush1.msra.mxu0 0.0
    %907 = vmatprep.subr.mxu0 0.0
    %908 = vmatpush1.msra.mxu0 0.0
    %909 = vmatprep.subr.mxu0 0.0
    %910 = vmatpush1.msra.mxu0 0.0
    %911 = vmatprep.subr.mxu0 0.0
    %912 = vmatpush1.msra.mxu0 0.0
    %913 = vmatprep.subr.mxu0 0.0
    %914 = vmatpush1.msra.mxu0 0.0
    %915 = vmatprep.subr.mxu0 0.0
    %916 = vmatpush1.msra.mxu0 0.0
    %917 = vmatprep.subr.mxu0 0.0
    %918 = vmatpush1.msra.mxu0 0.0
    %919 = vmatprep.subr.mxu0 0.0
    %920 = vmatpush1.msra.mxu0 0.0
    %921 = vmatprep.subr.mxu0 0.0
    %922 = vmatpush1.msra.mxu0 0.0
    %923 = vmatprep.subr.mxu0 0.0
    %924 = vmatpush1.msra.mxu0 0.0
    %925 = vmatprep.subr.mxu0 0.0
    %926 = vmatpush1.msra.mxu0 0.0
    %927 = vmatprep.subr.mxu0 0.0
    %928 = vmatpush1.msra.mxu0 0.0
    %929 = vmatprep.subr.mxu0 0.0
    %930 = vmatpush1.msra.mxu0 0.0
    %931 = vmatprep.subr.mxu0 0.0
    %932 = vmatpush1.msra.mxu0 0.0
    %933 = vmatprep.subr.mxu0 0.0
    %934 = vmatpush1.msra.mxu0 0.0
    %935 = vmatprep.subr.mxu0 0.0
    %936 = vmatpush1.msra.mxu0 0.0
    %937 = vmatprep.subr.mxu0 0.0
    %938 = vmatpush1.msra.mxu0 0.0
    %939 = vmatprep.subr.mxu0 0.0
    %940 = vmatpush1.msra.mxu0 0.0
    %941 = vmatprep.subr.mxu0 0.0
    %942 = vmatpush1.msra.mxu0 0.0
    %943 = vmatprep.subr.mxu0 0.0
    %944 = vmatpush1.msra.mxu0 0.0
    %945 = vmatprep.subr.mxu0 0.0
    %946 = vmatpush1.msra.mxu0 0.0
    %947 = vmatprep.subr.mxu0 0.0
    %948 = vmatpush1.msra.mxu0 0.0
    %949 = vmatprep.mubr.f32.mxu0 0.0
    %950 = vmatmul.mubr.f32.gmra.mrb[0].mxu0 %v883
    %v951 = vpop.f32.mrb[0].mxu0
    %v952 = vadd.f32 0.0, %v951
    %v953 = vpop.f32.mrb[0].mxu0
    %954 = vdwg.mxu0
    %v955 = vadd.f32 %v826, %v952
    %v956 = vxor.u32 %v955, 2147483648
    %v957 = vmul.f32 %v956, 1.442695
    %v958 = vpow.pop %v957
    %v959 = vadd.f32 %v958, 1.0
    %v960 = vrcp.pop %v959
    %v961 = vmul.f32 1.0, %v960
    %962 = vrot.lane.b32.xlu0 %v880, 64
    %v963 = vpop.permute.xlu0 %962
    %v965 = vadd.f32 %v952, %v963
    %967 = vrot.lane.b32.xlu0 %v965, 64
    %v968 = vpop.permute.xlu0 %967
    %v970 = vmul.f32 %v961, %v968
    %972 = vrot.lane.b32.xlu0 %v970, 64
    %v973 = vpop.permute.xlu0 %972
    %v975 = vadd.f32 %v826, %v973
    %v976 = vtanh.pop %v975
    %v977 = vsub.f32 1.0, %v961
    %979 = vrot.lane.b32.xlu0 %v976, 96
    %v980 = vpop.permute.xlu0 %979
    %v982 = vmul.f32 %v977, %v980
    %v983 = vmul.f32 %v961, 0.0
    %v984 = vadd.f32 %v982, %v983
    %986 = vrot.lane.b32.xlu0 %v984, 96
    %v987 = vpop.permute.xlu0 %986
    %v988 = vsel %vm881, %v987, 0
    %990 = vmatprep.subr.mxu0 0.0
    %991 = vmatpush1.msra.mxu0 %v871
    %992 = vmatprep.subr.mxu0 0.0
    %993 = vmatpush1.msra.mxu0 %v872
    %994 = vmatprep.subr.mxu0 0.0
    %995 = vmatpush1.msra.mxu0 %v873
    %996 = vmatprep.subr.mxu0 0.0
    %997 = vmatpush1.msra.mxu0 %v874
    %998 = vmatprep.subr.mxu0 0.0
    %999 = vmatpush1.msra.mxu0 0.0
    %1000 = vmatprep.subr.mxu0 0.0
    %1001 = vmatpush1.msra.mxu0 0.0
    %1002 = vmatprep.subr.mxu0 0.0
    %1003 = vmatpush1.msra.mxu0 0.0
    %1004 = vmatprep.subr.mxu0 0.0
    %1005 = vmatpush1.msra.mxu0 0.0
    %1006 = vmatprep.subr.mxu0 0.0
    %1007 = vmatpush1.msra.mxu0 0.0
    %1008 = vmatprep.subr.mxu0 0.0
    %1009 = vmatpush1.msra.mxu0 0.0
    %1010 = vmatprep.subr.mxu0 0.0
    %1011 = vmatpush1.msra.mxu0 0.0
    %1012 = vmatprep.subr.mxu0 0.0
    %1013 = vmatpush1.msra.mxu0 0.0
    %1014 = vmatprep.subr.mxu0 0.0
    %1015 = vmatpush1.msra.mxu0 0.0
    %1016 = vmatprep.subr.mxu0 0.0
    %1017 = vmatpush1.msra.mxu0 0.0
    %1018 = vmatprep.subr.mxu0 0.0
    %1019 = vmatpush1.msra.mxu0 0.0
    %1020 = vmatprep.subr.mxu0 0.0
    %1021 = vmatpush1.msra.mxu0 0.0
    %1022 = vmatprep.subr.mxu0 0.0
    %1023 = vmatpush1.msra.mxu0 0.0
    %1024 = vmatprep.subr.mxu0 0.0
    %1025 = vmatpush1.msra.mxu0 0.0
    %1026 = vmatprep.subr.mxu0 0.0
    %1027 = vmatpush1.msra.mxu0 0.0
    %1028 = vmatprep.subr.mxu0 0.0
    %1029 = vmatpush1.msra.mxu0 0.0
    %1030 = vmatprep.subr.mxu0 0.0
    %1031 = vmatpush1.msra.mxu0 0.0
    %1032 = vmatprep.subr.mxu0 0.0
    %1033 = vmatpush1.msra.mxu0 0.0
    %1034 = vmatprep.subr.mxu0 0.0
    %1035 = vmatpush1.msra.mxu0 0.0
    %1036 = vmatprep.subr.mxu0 0.0
    %1037 = vmatpush1.msra.mxu0 0.0
    %1038 = vmatprep.subr.mxu0 0.0
    %1039 = vmatpush1.msra.mxu0 0.0
    %1040 = vmatprep.subr.mxu0 0.0
    %1041 = vmatpush1.msra.mxu0 0.0
    %1042 = vmatprep.subr.mxu0 0.0
    %1043 = vmatpush1.msra.mxu0 0.0
    %1044 = vmatprep.subr.mxu0 0.0
    %1045 = vmatpush1.msra.mxu0 0.0
    %1046 = vmatprep.subr.mxu0 0.0
    %1047 = vmatpush1.msra.mxu0 0.0
    %1048 = vmatprep.subr.mxu0 0.0
    %1049 = vmatpush1.msra.mxu0 0.0
    %1050 = vmatprep.subr.mxu0 0.0
    %1051 = vmatpush1.msra.mxu0 0.0
    %1052 = vmatprep.subr.mxu0 0.0
    %1053 = vmatpush1.msra.mxu0 0.0
    %1054 = vmatprep.mubr.f32.mxu0 0.0
    %1055 = vmatmul.mubr.f32.gmra.mrb[0].mxu0 %v988
    %v1056 = vpop.f32.mrb[0].mxu0
    %v1057 = vadd.f32 0.0, %v1056
    %v1058 = vpop.f32.mrb[0].mxu0
    %1059 = vdwg.mxu0
    %v1060 = vadd.f32 %v832, %v1057
    %v1061 = vxor.u32 %v1060, 2147483648
    %v1062 = vmul.f32 %v1061, 1.442695
    %v1063 = vpow.pop %v1062
    %v1064 = vadd.f32 %v1063, 1.0
    %v1065 = vrcp.pop %v1064
    %v1066 = vmul.f32 1.0, %v1065
    %v1067 = vadd.f32 %v1057, %v963
    %1069 = vrot.lane.b32.xlu0 %v1067, 64
    %v1070 = vpop.permute.xlu0 %1069
    %v1072 = vmul.f32 %v1066, %v1070
    %1074 = vrot.lane.b32.xlu0 %v1072, 64
    %v1075 = vpop.permute.xlu0 %1074
    %v1077 = vadd.f32 %v832, %v1075
    %v1078 = vtanh.pop %v1077
    %v1079 = vsub.f32 1.0, %v1066
    %1081 = vrot.lane.b32.xlu0 %v1078, 96
    %v1082 = vpop.permute.xlu0 %1081
    %v1084 = vmul.f32 %v1079, %v1082
    %v1085 = vmul.f32 %v1066, %v984
    %v1086 = vadd.f32 %v1084, %v1085
    %1088 = vrot.lane.b32.xlu0 %v1086, 96
    %v1089 = vpop.permute.xlu0 %1088
    %v1090 = vsel %vm881, %v1089, 0
    %1092 = vmatprep.subr.mxu0 0.0
    %1093 = vmatpush1.msra.mxu0 %v871
    %1094 = vmatprep.subr.mxu0 0.0
    %1095 = vmatpush1.msra.mxu0 %v872
    %1096 = vmatprep.subr.mxu0 0.0
    %1097 = vmatpush1.msra.mxu0 %v873
    %1098 = vmatprep.subr.mxu0 0.0
    %1099 = vmatpush1.msra.mxu0 %v874
    %1100 = vmatprep.subr.mxu0 0.0
    %1101 = vmatpush1.msra.mxu0 0.0
    %1102 = vmatprep.subr.mxu0 0.0
    %1103 = vmatpush1.msra.mxu0 0.0
    %1104 = vmatprep.subr.mxu0 0.0
    %1105 = vmatpush1.msra.mxu0 0.0
    %1106 = vmatprep.subr.mxu0 0.0
    %1107 = vmatpush1.msra.mxu0 0.0
    %1108 = vmatprep.subr.mxu0 0.0
    %1109 = vmatpush1.msra.mxu0 0.0
    %1110 = vmatprep.subr.mxu0 0.0
    %1111 = vmatpush1.msra.mxu0 0.0
    %1112 = vmatprep.subr.mxu0 0.0
    %1113 = vmatpush1.msra.mxu0 0.0
    %1114 = vmatprep.subr.mxu0 0.0
    %1115 = vmatpush1.msra.mxu0 0.0
    %1116 = vmatprep.subr.mxu0 0.0
    %1117 = vmatpush1.msra.mxu0 0.0
    %1118 = vmatprep.subr.mxu0 0.0
    %1119 = vmatpush1.msra.mxu0 0.0
    %1120 = vmatprep.subr.mxu0 0.0
    %1121 = vmatpush1.msra.mxu0 0.0
    %1122 = vmatprep.subr.mxu0 0.0
    %1123 = vmatpush1.msra.mxu0 0.0
    %1124 = vmatprep.subr.mxu0 0.0
    %1125 = vmatpush1.msra.mxu0 0.0
    %1126 = vmatprep.subr.mxu0 0.0
    %1127 = vmatpush1.msra.mxu0 0.0
    %1128 = vmatprep.subr.mxu0 0.0
    %1129 = vmatpush1.msra.mxu0 0.0
    %1130 = vmatprep.subr.mxu0 0.0
    %1131 = vmatpush1.msra.mxu0 0.0
    %1132 = vmatprep.subr.mxu0 0.0
    %1133 = vmatpush1.msra.mxu0 0.0
    %1134 = vmatprep.subr.mxu0 0.0
    %1135 = vmatpush1.msra.mxu0 0.0
    %1136 = vmatprep.subr.mxu0 0.0
    %1137 = vmatpush1.msra.mxu0 0.0
    %1138 = vmatprep.subr.mxu0 0.0
    %1139 = vmatpush1.msra.mxu0 0.0
    %1140 = vmatprep.subr.mxu0 0.0
    %1141 = vmatpush1.msra.mxu0 0.0
    %1142 = vmatprep.subr.mxu0 0.0
    %1143 = vmatpush1.msra.mxu0 0.0
    %1144 = vmatprep.subr.mxu0 0.0
    %1145 = vmatpush1.msra.mxu0 0.0
    %1146 = vmatprep.subr.mxu0 0.0
    %1147 = vmatpush1.msra.mxu0 0.0
    %1148 = vmatprep.subr.mxu0 0.0
    %1149 = vmatpush1.msra.mxu0 0.0
    %1150 = vmatprep.subr.mxu0 0.0
    %1151 = vmatpush1.msra.mxu0 0.0
    %1152 = vmatprep.subr.mxu0 0.0
    %1153 = vmatpush1.msra.mxu0 0.0
    %1154 = vmatprep.subr.mxu0 0.0
    %1155 = vmatpush1.msra.mxu0 0.0
    %1156 = vmatprep.mubr.f32.mxu0 0.0
    %1157 = vmatmul.mubr.f32.gmra.mrb[0].mxu0 %v1090
    %v1158 = vpop.f32.mrb[0].mxu0
    %v1159 = vadd.f32 0.0, %v1158
    %v1160 = vpop.f32.mrb[0].mxu0
    %1161 = vdwg.mxu0
    %v1162 = vadd.f32 %v838, %v1159
    %v1163 = vxor.u32 %v1162, 2147483648
    %v1164 = vmul.f32 %v1163, 1.442695
    %v1165 = vpow.pop %v1164
    %v1166 = vadd.f32 %v1165, 1.0
    %v1167 = vrcp.pop %v1166
    %v1168 = vmul.f32 1.0, %v1167
    %v1169 = vadd.f32 %v1159, %v963
    %1171 = vrot.lane.b32.xlu0 %v1169, 64
    %v1172 = vpop.permute.xlu0 %1171
    %v1174 = vmul.f32 %v1168, %v1172
    %1176 = vrot.lane.b32.xlu0 %v1174, 64
    %v1177 = vpop.permute.xlu0 %1176
    %v1179 = vadd.f32 %v838, %v1177
    %v1180 = vtanh.pop %v1179
    %v1181 = vsub.f32 1.0, %v1168
    %1183 = vrot.lane.b32.xlu0 %v1180, 96
    %v1184 = vpop.permute.xlu0 %1183
    %v1186 = vmul.f32 %v1181, %v1184
    %v1187 = vmul.f32 %v1168, %v1086
    %v1188 = vadd.f32 %v1186, %v1187
    %1190 = vrot.lane.b32.xlu0 %v1188, 96
    %v1191 = vpop.permute.xlu0 %1190
    %v1192 = vsel %vm881, %v1191, 0
    %1194 = vmatprep.subr.mxu0 0.0
    %1195 = vmatpush1.msra.mxu0 %v871
    %1196 = vmatprep.subr.mxu0 0.0
    %1197 = vmatpush1.msra.mxu0 %v872
    %1198 = vmatprep.subr.mxu0 0.0
    %1199 = vmatpush1.msra.mxu0 %v873
    %1200 = vmatprep.subr.mxu0 0.0
    %1201 = vmatpush1.msra.mxu0 %v874
    %1202 = vmatprep.subr.mxu0 0.0
    %1203 = vmatpush1.msra.mxu0 0.0
    %1204 = vmatprep.subr.mxu0 0.0
    %1205 = vmatpush1.msra.mxu0 0.0
    %1206 = vmatprep.subr.mxu0 0.0
    %1207 = vmatpush1.msra.mxu0 0.0
    %1208 = vmatprep.subr.mxu0 0.0
    %1209 = vmatpush1.msra.mxu0 0.0
    %1210 = vmatprep.subr.mxu0 0.0
    %1211 = vmatpush1.msra.mxu0 0.0
    %1212 = vmatprep.subr.mxu0 0.0
    %1213 = vmatpush1.msra.mxu0 0.0
    %1214 = vmatprep.subr.mxu0 0.0
    %1215 = vmatpush1.msra.mxu0 0.0
    %1216 = vmatprep.subr.mxu0 0.0
    %1217 = vmatpush1.msra.mxu0 0.0
    %1218 = vmatprep.subr.mxu0 0.0
    %1219 = vmatpush1.msra.mxu0 0.0
    %1220 = vmatprep.subr.mxu0 0.0
    %1221 = vmatpush1.msra.mxu0 0.0
    %1222 = vmatprep.subr.mxu0 0.0
    %1223 = vmatpush1.msra.mxu0 0.0
    %1224 = vmatprep.subr.mxu0 0.0
    %1225 = vmatpush1.msra.mxu0 0.0
    %1226 = vmatprep.subr.mxu0 0.0
    %1227 = vmatpush1.msra.mxu0 0.0
    %1228 = vmatprep.subr.mxu0 0.0
    %1229 = vmatpush1.msra.mxu0 0.0
    %1230 = vmatprep.subr.mxu0 0.0
    %1231 = vmatpush1.msra.mxu0 0.0
    %1232 = vmatprep.subr.mxu0 0.0
    %1233 = vmatpush1.msra.mxu0 0.0
    %1234 = vmatprep.subr.mxu0 0.0
    %1235 = vmatpush1.msra.mxu0 0.0
    %1236 = vmatprep.subr.mxu0 0.0
    %1237 = vmatpush1.msra.mxu0 0.0
    %1238 = vmatprep.subr.mxu0 0.0
    %1239 = vmatpush1.msra.mxu0 0.0
    %1240 = vmatprep.subr.mxu0 0.0
    %1241 = vmatpush1.msra.mxu0 0.0
    %1242 = vmatprep.subr.mxu0 0.0
    %1243 = vmatpush1.msra.mxu0 0.0
    %1244 = vmatprep.subr.mxu0 0.0
    %1245 = vmatpush1.msra.mxu0 0.0
    %1246 = vmatprep.subr.mxu0 0.0
    %1247 = vmatpush1.msra.mxu0 0.0
    %1248 = vmatprep.subr.mxu0 0.0
    %1249 = vmatpush1.msra.mxu0 0.0
    %1250 = vmatprep.subr.mxu0 0.0
    %1251 = vmatpush1.msra.mxu0 0.0
    %1252 = vmatprep.subr.mxu0 0.0
    %1253 = vmatpush1.msra.mxu0 0.0
    %1254 = vmatprep.subr.mxu0 0.0
    %1255 = vmatpush1.msra.mxu0 0.0
    %1256 = vmatprep.subr.mxu0 0.0
    %1257 = vmatpush1.msra.mxu0 0.0
    %1258 = vmatprep.mubr.f32.mxu0 0.0
    %1259 = vmatmul.mubr.f32.gmra.mrb[0].mxu0 %v1192
    %v1260 = vpop.f32.mrb[0].mxu0
    %v1261 = vadd.f32 0.0, %v1260
    %v1262 = vpop.f32.mrb[0].mxu0
    %1263 = vdwg.mxu0
    %v1264 = vadd.f32 %v844, %v1261
    %v1265 = vxor.u32 %v1264, 2147483648
    %v1266 = vmul.f32 %v1265, 1.442695
    %v1267 = vpow.pop %v1266
    %v1268 = vadd.f32 %v1267, 1.0
    %v1269 = vrcp.pop %v1268
    %v1270 = vmul.f32 1.0, %v1269
    %v1271 = vadd.f32 %v1261, %v963
    %1273 = vrot.lane.b32.xlu0 %v1271, 64
    %v1274 = vpop.permute.xlu0 %1273
    %v1276 = vmul.f32 %v1270, %v1274
    %1278 = vrot.lane.b32.xlu0 %v1276, 64
    %v1279 = vpop.permute.xlu0 %1278
    %v1281 = vadd.f32 %v844, %v1279
    %v1282 = vtanh.pop %v1281
    %v1283 = vsub.f32 1.0, %v1270
    %1285 = vrot.lane.b32.xlu0 %v1282, 96
    %v1286 = vpop.permute.xlu0 %1285
    %v1288 = vmul.f32 %v1283, %v1286
    %v1289 = vmul.f32 %v1270, %v1188
    %v1290 = vadd.f32 %v1288, %v1289
    %1292 = vrot.lane.b32.xlu0 %v1290, 96
    %v1293 = vpop.permute.xlu0 %1292
    %v1294 = vsel %vm881, %v1293, 0
    %1296 = vmatprep.subr.mxu0 0.0
    %1297 = vmatpush1.msra.mxu0 %v871
    %1298 = vmatprep.subr.mxu0 0.0
    %1299 = vmatpush1.msra.mxu0 %v872
    %1300 = vmatprep.subr.mxu0 0.0
    %1301 = vmatpush1.msra.mxu0 %v873
    %1302 = vmatprep.subr.mxu0 0.0
    %1303 = vmatpush1.msra.mxu0 %v874
    %1304 = vmatprep.subr.mxu0 0.0
    %1305 = vmatpush1.msra.mxu0 0.0
    %1306 = vmatprep.subr.mxu0 0.0
    %1307 = vmatpush1.msra.mxu0 0.0
    %1308 = vmatprep.subr.mxu0 0.0
    %1309 = vmatpush1.msra.mxu0 0.0
    %1310 = vmatprep.subr.mxu0 0.0
    %1311 = vmatpush1.msra.mxu0 0.0
    %1312 = vmatprep.subr.mxu0 0.0
    %1313 = vmatpush1.msra.mxu0 0.0
    %1314 = vmatprep.subr.mxu0 0.0
    %1315 = vmatpush1.msra.mxu0 0.0
    %1316 = vmatprep.subr.mxu0 0.0
    %1317 = vmatpush1.msra.mxu0 0.0
    %1318 = vmatprep.subr.mxu0 0.0
    %1319 = vmatpush1.msra.mxu0 0.0
    %1320 = vmatprep.subr.mxu0 0.0
    %1321 = vmatpush1.msra.mxu0 0.0
    %1322 = vmatprep.subr.mxu0 0.0
    %1323 = vmatpush1.msra.mxu0 0.0
    %1324 = vmatprep.subr.mxu0 0.0
    %1325 = vmatpush1.msra.mxu0 0.0
    %1326 = vmatprep.subr.mxu0 0.0
    %1327 = vmatpush1.msra.mxu0 0.0
    %1328 = vmatprep.subr.mxu0 0.0
    %1329 = vmatpush1.msra.mxu0 0.0
    %1330 = vmatprep.subr.mxu0 0.0
    %1331 = vmatpush1.msra.mxu0 0.0
    %1332 = vmatprep.subr.mxu0 0.0
    %1333 = vmatpush1.msra.mxu0 0.0
    %1334 = vmatprep.subr.mxu0 0.0
    %1335 = vmatpush1.msra.mxu0 0.0
    %1336 = vmatprep.subr.mxu0 0.0
    %1337 = vmatpush1.msra.mxu0 0.0
    %1338 = vmatprep.subr.mxu0 0.0
    %1339 = vmatpush1.msra.mxu0 0.0
    %1340 = vmatprep.subr.mxu0 0.0
    %1341 = vmatpush1.msra.mxu0 0.0
    %1342 = vmatprep.subr.mxu0 0.0
    %1343 = vmatpush1.msra.mxu0 0.0
    %1344 = vmatprep.subr.mxu0 0.0
    %1345 = vmatpush1.msra.mxu0 0.0
    %1346 = vmatprep.subr.mxu0 0.0
    %1347 = vmatpush1.msra.mxu0 0.0
    %1348 = vmatprep.subr.mxu0 0.0
    %1349 = vmatpush1.msra.mxu0 0.0
    %1350 = vmatprep.subr.mxu0 0.0
    %1351 = vmatpush1.msra.mxu0 0.0
    %1352 = vmatprep.subr.mxu0 0.0
    %1353 = vmatpush1.msra.mxu0 0.0
    %1354 = vmatprep.subr.mxu0 0.0
    %1355 = vmatpush1.msra.mxu0 0.0
    %1356 = vmatprep.subr.mxu0 0.0
    %1357 = vmatpush1.msra.mxu0 0.0
    %1358 = vmatprep.subr.mxu0 0.0
    %1359 = vmatpush1.msra.mxu0 0.0
    %1360 = vmatprep.mubr.f32.mxu0 0.0
    %1361 = vmatmul.mubr.f32.gmra.mrb[0].mxu0 %v1294
    %v1362 = vpop.f32.mrb[0].mxu0
    %v1363 = vadd.f32 0.0, %v1362
    %v1364 = vpop.f32.mrb[0].mxu0
    %1365 = vdwg.mxu0
    %v1366 = vadd.f32 %v850, %v1363
    %v1367 = vxor.u32 %v1366, 2147483648
    %v1368 = vmul.f32 %v1367, 1.442695
    %v1369 = vpow.pop %v1368
    %v1370 = vadd.f32 %v1369, 1.0
    %v1371 = vrcp.pop %v1370
    %v1372 = vmul.f32 1.0, %v1371
    %v1373 = vadd.f32 %v1363, %v963
    %1375 = vrot.lane.b32.xlu0 %v1373, 64
    %v1376 = vpop.permute.xlu0 %1375
    %v1378 = vmul.f32 %v1372, %v1376
    %1380 = vrot.lane.b32.xlu0 %v1378, 64
    %v1381 = vpop.permute.xlu0 %1380
    %v1383 = vadd.f32 %v850, %v1381
    %v1384 = vtanh.pop %v1383
    %v1385 = vsub.f32 1.0, %v1372
    %1387 = vrot.lane.b32.xlu0 %v1384, 96
    %v1388 = vpop.permute.xlu0 %1387
    %v1390 = vmul.f32 %v1385, %v1388
    %v1391 = vmul.f32 %v1372, %v1290
    %v1392 = vadd.f32 %v1390, %v1391
    %1394 = vrot.lane.b32.xlu0 %v1392, 96
    %v1395 = vpop.permute.xlu0 %1394
    %v1396 = vsel %vm881, %v1395, 0
    %1398 = vmatprep.subr.mxu0 0.0
    %1399 = vmatpush1.msra.mxu0 %v871
    %1400 = vmatprep.subr.mxu0 0.0
    %1401 = vmatpush1.msra.mxu0 %v872
    %1402 = vmatprep.subr.mxu0 0.0
    %1403 = vmatpush1.msra.mxu0 %v873
    %1404 = vmatprep.subr.mxu0 0.0
    %1405 = vmatpush1.msra.mxu0 %v874
    %1406 = vmatprep.subr.mxu0 0.0
    %1407 = vmatpush1.msra.mxu0 0.0
    %1408 = vmatprep.subr.mxu0 0.0
    %1409 = vmatpush1.msra.mxu0 0.0
    %1410 = vmatprep.subr.mxu0 0.0
    %1411 = vmatpush1.msra.mxu0 0.0
    %1412 = vmatprep.subr.mxu0 0.0
    %1413 = vmatpush1.msra.mxu0 0.0
    %1414 = vmatprep.subr.mxu0 0.0
    %1415 = vmatpush1.msra.mxu0 0.0
    %1416 = vmatprep.subr.mxu0 0.0
    %1417 = vmatpush1.msra.mxu0 0.0
    %1418 = vmatprep.subr.mxu0 0.0
    %1419 = vmatpush1.msra.mxu0 0.0
    %1420 = vmatprep.subr.mxu0 0.0
    %1421 = vmatpush1.msra.mxu0 0.0
    %1422 = vmatprep.subr.mxu0 0.0
    %1423 = vmatpush1.msra.mxu0 0.0
    %1424 = vmatprep.subr.mxu0 0.0
    %1425 = vmatpush1.msra.mxu0 0.0
    %1426 = vmatprep.subr.mxu0 0.0
    %1427 = vmatpush1.msra.mxu0 0.0
    %1428 = vmatprep.subr.mxu0 0.0
    %1429 = vmatpush1.msra.mxu0 0.0
    %1430 = vmatprep.subr.mxu0 0.0
    %1431 = vmatpush1.msra.mxu0 0.0
    %1432 = vmatprep.subr.mxu0 0.0
    %1433 = vmatpush1.msra.mxu0 0.0
    %1434 = vmatprep.subr.mxu0 0.0
    %1435 = vmatpush1.msra.mxu0 0.0
    %1436 = vmatprep.subr.mxu0 0.0
    %1437 = vmatpush1.msra.mxu0 0.0
    %1438 = vmatprep.subr.mxu0 0.0
    %1439 = vmatpush1.msra.mxu0 0.0
    %1440 = vmatprep.subr.mxu0 0.0
    %1441 = vmatpush1.msra.mxu0 0.0
    %1442 = vmatprep.subr.mxu0 0.0
    %1443 = vmatpush1.msra.mxu0 0.0
    %1444 = vmatprep.subr.mxu0 0.0
    %1445 = vmatpush1.msra.mxu0 0.0
    %1446 = vmatprep.subr.mxu0 0.0
    %1447 = vmatpush1.msra.mxu0 0.0
    %1448 = vmatprep.subr.mxu0 0.0
    %1449 = vmatpush1.msra.mxu0 0.0
    %1450 = vmatprep.subr.mxu0 0.0
    %1451 = vmatpush1.msra.mxu0 0.0
    %1452 = vmatprep.subr.mxu0 0.0
    %1453 = vmatpush1.msra.mxu0 0.0
    %1454 = vmatprep.subr.mxu0 0.0
    %1455 = vmatpush1.msra.mxu0 0.0
    %1456 = vmatprep.subr.mxu0 0.0
    %1457 = vmatpush1.msra.mxu0 0.0
    %1458 = vmatprep.subr.mxu0 0.0
    %1459 = vmatpush1.msra.mxu0 0.0
    %1460 = vmatprep.subr.mxu0 0.0
    %1461 = vmatpush1.msra.mxu0 0.0
    %1462 = vmatprep.mubr.f32.mxu0 0.0
    %1463 = vmatmul.mubr.f32.gmra.mrb[0].mxu0 %v1396
    %v1464 = vpop.f32.mrb[0].mxu0
    %v1465 = vadd.f32 0.0, %v1464
    %v1466 = vpop.f32.mrb[0].mxu0
    %1467 = vdwg.mxu0
    %v1468 = vadd.f32 %v856, %v1465
    %v1469 = vxor.u32 %v1468, 2147483648
    %v1470 = vmul.f32 %v1469, 1.442695
    %v1471 = vpow.pop %v1470
    %v1472 = vadd.f32 %v1471, 1.0
    %v1473 = vrcp.pop %v1472
    %v1474 = vmul.f32 1.0, %v1473
    %v1475 = vadd.f32 %v1465, %v963
    %1477 = vrot.lane.b32.xlu0 %v1475, 64
    %v1478 = vpop.permute.xlu0 %1477
    %v1480 = vmul.f32 %v1474, %v1478
    %1482 = vrot.lane.b32.xlu0 %v1480, 64
    %v1483 = vpop.permute.xlu0 %1482
    %v1485 = vadd.f32 %v856, %v1483
    %v1486 = vtanh.pop %v1485
    %v1487 = vsub.f32 1.0, %v1474
    %1489 = vrot.lane.b32.xlu0 %v1486, 96
    %v1490 = vpop.permute.xlu0 %1489
    %v1492 = vmul.f32 %v1487, %v1490
    %v1493 = vmul.f32 %v1474, %v1392
    %v1494 = vadd.f32 %v1492, %v1493
    %1496 = vrot.lane.b32.xlu0 %v1494, 96
    %v1497 = vpop.permute.xlu0 %1496
    %v1498 = vsel %vm881, %v1497, 0
    %1500 = vmatprep.subr.mxu0 0.0
    %1501 = vmatpush1.msra.mxu0 %v871
    %1502 = vmatprep.subr.mxu0 0.0
    %1503 = vmatpush1.msra.mxu0 %v872
    %1504 = vmatprep.subr.mxu0 0.0
    %1505 = vmatpush1.msra.mxu0 %v873
    %1506 = vmatprep.subr.mxu0 0.0
    %1507 = vmatpush1.msra.mxu0 %v874
    %1508 = vmatprep.subr.mxu0 0.0
    %1509 = vmatpush1.msra.mxu0 0.0
    %1510 = vmatprep.subr.mxu0 0.0
    %1511 = vmatpush1.msra.mxu0 0.0
    %1512 = vmatprep.subr.mxu0 0.0
    %1513 = vmatpush1.msra.mxu0 0.0
    %1514 = vmatprep.subr.mxu0 0.0
    %1515 = vmatpush1.msra.mxu0 0.0
    %1516 = vmatprep.subr.mxu0 0.0
    %1517 = vmatpush1.msra.mxu0 0.0
    %1518 = vmatprep.subr.mxu0 0.0
    %1519 = vmatpush1.msra.mxu0 0.0
    %1520 = vmatprep.subr.mxu0 0.0
    %1521 = vmatpush1.msra.mxu0 0.0
    %1522 = vmatprep.subr.mxu0 0.0
    %1523 = vmatpush1.msra.mxu0 0.0
    %1524 = vmatprep.subr.mxu0 0.0
    %1525 = vmatpush1.msra.mxu0 0.0
    %1526 = vmatprep.subr.mxu0 0.0
    %1527 = vmatpush1.msra.mxu0 0.0
    %1528 = vmatprep.subr.mxu0 0.0
    %1529 = vmatpush1.msra.mxu0 0.0
    %1530 = vmatprep.subr.mxu0 0.0
    %1531 = vmatpush1.msra.mxu0 0.0
    %1532 = vmatprep.subr.mxu0 0.0
    %1533 = vmatpush1.msra.mxu0 0.0
    %1534 = vmatprep.subr.mxu0 0.0
    %1535 = vmatpush1.msra.mxu0 0.0
    %1536 = vmatprep.subr.mxu0 0.0
    %1537 = vmatpush1.msra.mxu0 0.0
    %1538 = vmatprep.subr.mxu0 0.0
    %1539 = vmatpush1.msra.mxu0 0.0
    %1540 = vmatprep.subr.mxu0 0.0
    %1541 = vmatpush1.msra.mxu0 0.0
    %1542 = vmatprep.subr.mxu0 0.0
    %1543 = vmatpush1.msra.mxu0 0.0
    %1544 = vmatprep.subr.mxu0 0.0
    %1545 = vmatpush1.msra.mxu0 0.0
    %1546 = vmatprep.subr.mxu0 0.0
    %1547 = vmatpush1.msra.mxu0 0.0
    %1548 = vmatprep.subr.mxu0 0.0
    %1549 = vmatpush1.msra.mxu0 0.0
    %1550 = vmatprep.subr.mxu0 0.0
    %1551 = vmatpush1.msra.mxu0 0.0
    %1552 = vmatprep.subr.mxu0 0.0
    %1553 = vmatpush1.msra.mxu0 0.0
    %1554 = vmatprep.subr.mxu0 0.0
    %1555 = vmatpush1.msra.mxu0 0.0
    %1556 = vmatprep.subr.mxu0 0.0
    %1557 = vmatpush1.msra.mxu0 0.0
    %1558 = vmatprep.subr.mxu0 0.0
    %1559 = vmatpush1.msra.mxu0 0.0
    %1560 = vmatprep.subr.mxu0 0.0
    %1561 = vmatpush1.msra.mxu0 0.0
    %1562 = vmatprep.subr.mxu0 0.0
    %1563 = vmatpush1.msra.mxu0 0.0
    %1564 = vmatprep.mubr.f32.mxu0 0.0
    %1565 = vmatmul.mubr.f32.gmra.mrb[0].mxu0 %v1498
    %v1566 = vpop.f32.mrb[0].mxu0
    %v1567 = vadd.f32 0.0, %v1566
    %v1568 = vpop.f32.mrb[0].mxu0
    %1569 = vdwg.mxu0
    %v1570 = vadd.f32 %v862, %v1567
    %v1571 = vxor.u32 %v1570, 2147483648
    %v1572 = vmul.f32 %v1571, 1.442695
    %v1573 = vpow.pop %v1572
    %v1574 = vadd.f32 %v1573, 1.0
    %v1575 = vrcp.pop %v1574
    %v1576 = vmul.f32 1.0, %v1575
    %v1577 = vadd.f32 %v1567, %v963
    %1579 = vrot.lane.b32.xlu0 %v1577, 64
    %v1580 = vpop.permute.xlu0 %1579
    %v1582 = vmul.f32 %v1576, %v1580
    %1584 = vrot.lane.b32.xlu0 %v1582, 64
    %v1585 = vpop.permute.xlu0 %1584
    %v1587 = vadd.f32 %v862, %v1585
    %v1588 = vtanh.pop %v1587
    %v1589 = vsub.f32 1.0, %v1576
    %1591 = vrot.lane.b32.xlu0 %v1588, 96
    %v1592 = vpop.permute.xlu0 %1591
    %v1594 = vmul.f32 %v1589, %v1592
    %v1595 = vmul.f32 %v1576, %v1494
    %v1596 = vadd.f32 %v1594, %v1595
    %1598 = vrot.lane.b32.xlu0 %v1596, 96
    %v1599 = vpop.permute.xlu0 %1598
    %v1600 = vsel %vm881, %v1599, 0
    %1602 = vmatprep.subr.mxu0 0.0
    %1603 = vmatpush1.msra.mxu0 %v871
    %1604 = vmatprep.subr.mxu0 0.0
    %1605 = vmatpush1.msra.mxu0 %v872
    %1606 = vmatprep.subr.mxu0 0.0
    %1607 = vmatpush1.msra.mxu0 %v873
    %1608 = vmatprep.subr.mxu0 0.0
    %1609 = vmatpush1.msra.mxu0 %v874
    %1610 = vmatprep.subr.mxu0 0.0
    %1611 = vmatpush1.msra.mxu0 0.0
    %1612 = vmatprep.subr.mxu0 0.0
    %1613 = vmatpush1.msra.mxu0 0.0
    %1614 = vmatprep.subr.mxu0 0.0
    %1615 = vmatpush1.msra.mxu0 0.0
    %1616 = vmatprep.subr.mxu0 0.0
    %1617 = vmatpush1.msra.mxu0 0.0
    %1618 = vmatprep.subr.mxu0 0.0
    %1619 = vmatpush1.msra.mxu0 0.0
    %1620 = vmatprep.subr.mxu0 0.0
    %1621 = vmatpush1.msra.mxu0 0.0
    %1622 = vmatprep.subr.mxu0 0.0
    %1623 = vmatpush1.msra.mxu0 0.0
    %1624 = vmatprep.subr.mxu0 0.0
    %1625 = vmatpush1.msra.mxu0 0.0
    %1626 = vmatprep.subr.mxu0 0.0
    %1627 = vmatpush1.msra.mxu0 0.0
    %1628 = vmatprep.subr.mxu0 0.0
    %1629 = vmatpush1.msra.mxu0 0.0
    %1630 = vmatprep.subr.mxu0 0.0
    %1631 = vmatpush1.msra.mxu0 0.0
    %1632 = vmatprep.subr.mxu0 0.0
    %1633 = vmatpush1.msra.mxu0 0.0
    %1634 = vmatprep.subr.mxu0 0.0
    %1635 = vmatpush1.msra.mxu0 0.0
    %1636 = vmatprep.subr.mxu0 0.0
    %1637 = vmatpush1.msra.mxu0 0.0
    %1638 = vmatprep.subr.mxu0 0.0
    %1639 = vmatpush1.msra.mxu0 0.0
    %1640 = vmatprep.subr.mxu0 0.0
    %1641 = vmatpush1.msra.mxu0 0.0
    %1642 = vmatprep.subr.mxu0 0.0
    %1643 = vmatpush1.msra.mxu0 0.0
    %1644 = vmatprep.subr.mxu0 0.0
    %1645 = vmatpush1.msra.mxu0 0.0
    %1646 = vmatprep.subr.mxu0 0.0
    %1647 = vmatpush1.msra.mxu0 0.0
    %1648 = vmatprep.subr.mxu0 0.0
    %1649 = vmatpush1.msra.mxu0 0.0
    %1650 = vmatprep.subr.mxu0 0.0
    %1651 = vmatpush1.msra.mxu0 0.0
    %1652 = vmatprep.subr.mxu0 0.0
    %1653 = vmatpush1.msra.mxu0 0.0
    %1654 = vmatprep.subr.mxu0 0.0
    %1655 = vmatpush1.msra.mxu0 0.0
    %1656 = vmatprep.subr.mxu0 0.0
    %1657 = vmatpush1.msra.mxu0 0.0
    %1658 = vmatprep.subr.mxu0 0.0
    %1659 = vmatpush1.msra.mxu0 0.0
    %1660 = vmatprep.subr.mxu0 0.0
    %1661 = vmatpush1.msra.mxu0 0.0
    %1662 = vmatprep.subr.mxu0 0.0
    %1663 = vmatpush1.msra.mxu0 0.0
    %1664 = vmatprep.subr.mxu0 0.0
    %1665 = vmatpush1.msra.mxu0 0.0
    %1666 = vmatprep.mubr.f32.mxu0 0.0
    %1667 = vmatmul.mubr.f32.gmra.mrb[0].mxu0 %v1600
    %v1668 = vpop.f32.mrb[0].mxu0
    %v1669 = vadd.f32 0.0, %v1668
    %v1670 = vpop.f32.mrb[0].mxu0
    %1671 = vdwg.mxu0
    %v1672 = vadd.f32 %v868, %v1669
    %v1673 = vxor.u32 %v1672, 2147483648
    %v1674 = vmul.f32 %v1673, 1.442695
    %v1675 = vpow.pop %v1674
    %v1676 = vadd.f32 %v1675, 1.0
    %v1677 = vrcp.pop %v1676
    %v1678 = vmul.f32 1.0, %v1677
    %v1679 = vadd.f32 %v1669, %v963
    %1681 = vrot.lane.b32.xlu0 %v1679, 64
    %v1682 = vpop.permute.xlu0 %1681
    %v1684 = vmul.f32 %v1678, %v1682
    %1686 = vrot.lane.b32.xlu0 %v1684, 64
    %v1687 = vpop.permute.xlu0 %1686
    %v1689 = vadd.f32 %v868, %v1687
    %v1690 = vtanh.pop %v1689
    %v1691 = vsub.f32 1.0, %v1678
    %1693 = vrot.lane.b32.xlu0 %v1690, 96
    %v1694 = vpop.permute.xlu0 %1693
    %v1696 = vmul.f32 %v1691, %v1694
    %v1697 = vmul.f32 %v1678, %v1596
    %v1698 = vadd.f32 %v1696, %v1697
    %v1699 = vld [vmem:[%s4] sm:$0x1]
    %v1700 = vld [vmem:[#allocation2] sm:$0x1]
    %1702 = vset.pattern.permute.xlu0 0
    %1703 = vperm.xlu0 %1702, %v1700
    %v1704 = vpop.permute.xlu0 %1703
    %v1706 = vlaneseq
    %v1707 = vshrl.u32 %v1706, 7
    %v1708 = vsub.s32 0, %v1707
    %v1709 = vrot.slane %v1704, %v1708
    %1711 = vrot.lane.b32.xlu0 %v1698, 96
    %v1712 = vpop.permute.xlu0 %1711
    %v1714 = vsel %vm881, %v1699, 0
    %v1716 = vsel %vm881, %v1712, 0
    %1718 = vmatprep.subr.mxu0 0.0
    %1719 = vmatpush1.xpose.msra.mxu0 %v988
    %1720 = vmatprep.subr.mxu0 0.0
    %1721 = vmatpush1.xpose.msra.mxu0 %v1090
    %1722 = vmatprep.subr.mxu0 0.0
    %1723 = vmatpush1.xpose.msra.mxu0 %v1192
    %1724 = vmatprep.subr.mxu0 0.0
    %1725 = vmatpush1.xpose.msra.mxu0 %v1294
    %1726 = vmatprep.subr.mxu0 0.0
    %1727 = vmatpush1.xpose.msra.mxu0 %v1396
    %1728 = vmatprep.subr.mxu0 0.0
    %1729 = vmatpush1.xpose.msra.mxu0 %v1498
    %1730 = vmatprep.subr.mxu0 0.0
    %1731 = vmatpush1.xpose.msra.mxu0 %v1600
    %1732 = vmatprep.subr.mxu0 0.0
    %1733 = vmatpush1.xpose.msra.mxu0 %v1716
    %1734 = vmatprep.subr.mxu0 0.0
    %1735 = vmatpush1.xpose.msra.mxu0 0.0
    %1736 = vmatprep.subr.mxu0 0.0
    %1737 = vmatpush1.xpose.msra.mxu0 0.0
    %1738 = vmatprep.subr.mxu0 0.0
    %1739 = vmatpush1.xpose.msra.mxu0 0.0
    %1740 = vmatprep.subr.mxu0 0.0
    %1741 = vmatpush1.xpose.msra.mxu0 0.0
    %1742 = vmatprep.subr.mxu0 0.0
    %1743 = vmatpush1.xpose.msra.mxu0 0.0
    %1744 = vmatprep.subr.mxu0 0.0
    %1745 = vmatpush1.xpose.msra.mxu0 0.0
    %1746 = vmatprep.subr.mxu0 0.0
    %1747 = vmatpush1.xpose.msra.mxu0 0.0
    %1748 = vmatprep.subr.mxu0 0.0
    %1749 = vmatpush1.xpose.msra.mxu0 0.0
    %1750 = vmatprep.subr.mxu0 0.0
    %1751 = vmatpush1.xpose.msra.mxu0 0.0
    %1752 = vmatprep.subr.mxu0 0.0
    %1753 = vmatpush1.xpose.msra.mxu0 0.0
    %1754 = vmatprep.subr.mxu0 0.0
    %1755 = vmatpush1.xpose.msra.mxu0 0.0
    %1756 = vmatprep.subr.mxu0 0.0
    %1757 = vmatpush1.xpose.msra.mxu0 0.0
    %1758 = vmatprep.subr.mxu0 0.0
    %1759 = vmatpush1.xpose.msra.mxu0 0.0
    %1760 = vmatprep.subr.mxu0 0.0
    %1761 = vmatpush1.xpose.msra.mxu0 0.0
    %1762 = vmatprep.subr.mxu0 0.0
    %1763 = vmatpush1.xpose.msra.mxu0 0.0
    %1764 = vmatprep.subr.mxu0 0.0
    %1765 = vmatpush1.xpose.msra.mxu0 0.0
    %1766 = vmatprep.subr.mxu0 0.0
    %1767 = vmatpush1.xpose.msra.mxu0 0.0
    %1768 = vmatprep.subr.mxu0 0.0
    %1769 = vmatpush1.xpose.msra.mxu0 0.0
    %1770 = vmatprep.subr.mxu0 0.0
    %1771 = vmatpush1.xpose.msra.mxu0 0.0
    %1772 = vmatprep.subr.mxu0 0.0
    %1773 = vmatpush1.xpose.msra.mxu0 0.0
    %1774 = vmatprep.subr.mxu0 0.0
    %1775 = vmatpush1.xpose.msra.mxu0 0.0
    %1776 = vmatprep.subr.mxu0 0.0
    %1777 = vmatpush1.xpose.msra.mxu0 0.0
    %1778 = vmatprep.subr.mxu0 0.0
    %1779 = vmatpush1.xpose.msra.mxu0 0.0
    %1780 = vmatprep.subr.mxu0 0.0
    %1781 = vmatpush1.xpose.msra.mxu0 0.0
    %1782 = vmatprep.mubr.f32.mxu0 0.0
    %1783 = vmatmul.mubr.f32.gmra.mrb[0].mxu0 %v1714
    %v1784 = vpop.f32.mrb[0].mxu0
    %v1785 = vadd.f32 %v1709, %v1784
    %v1786 = vpop.f32.mrb[0].mxu0
    %1787 = vdwg.mxu0
    %vm1788 = vcmask 516096
    %1789 = vst.msk [vmem:[#allocation3] sm:$0x1] %vm1788, %v1785
    // Predicated region
    $region26: #{tpu_custom_call.1} parent=1 // pred_check
      _
    $region27: #{tpu_custom_call.1} parent=1 // pred_check_branch
      %1791 = sbr.rel (0) target = $region29
    $region28: #{tpu_custom_call.1} parent=1 // pred_region
      %s1793 = ssub.s32 16, 16
      %1794 = vsyncadd [#allocation4], %s1793
      %s1796 = sshll.u32 [#allocation3], 4
      %s1797 = int_to_ptr.vmem [resolvable:$true] %s1796
      %1799 = dma.vmem_to_hbm [thread:$0]  %s1797, 16, %s6, [#allocation4]
    $region29: #{tpu_custom_call.1} parent=1 // pred_fallthru
      _
    // Predicated region
    $region30: #{tpu_custom_call.1} parent=1 // pred_check
      _
    $region31: #{tpu_custom_call.1} parent=1 // pred_check_branch
      %1801 = sbr.rel (0) target = $region33
    $region32: #{tpu_custom_call.1} parent=1 // pred_region
      %1802 = dma.done [#allocation4], 16
    $region33: #{tpu_custom_call.1} parent=1 // pred_fallthru
      _
    %1803 = vsyncpa [#allocation4], 1

</llo_original>
